<compile_context>
chip_gen: v7x
topology: tpu7x:2x2x1
jax: 0.10.0
libtpu: 0.0.40
codegen_flags: <defaults>
</compile_context>

<pallas_src>
import math
from functools import partial

import jax
import jax.numpy as jnp
from jax import lax
from jax.experimental import pallas as pl
from jax.experimental.pallas import tpu as pltpu

# ----------------------------- config ---------------------------------------
CFG = dict(emb_dim=32, context_length=8, n_heads=4, drop_rate=0.0, qkv_bias=True)
LN_EPS = 1e-5


# ----------------------------- helpers ---------------------------------------
def _layernorm(z, w_row, b_row):
    mu = jnp.mean(z, axis=-1, keepdims=True)
    var = jnp.mean((z - mu) ** 2, axis=-1, keepdims=True)
    return (z - mu) * lax.rsqrt(var + LN_EPS) * w_row + b_row


def _gelu_tanh(x):
    c = math.sqrt(2.0 / math.pi)
    return 0.5 * x * (1.0 + jnp.tanh(c * (x + 0.044715 * x * x * x)))


# ----------------------------- kernel ---------------------------------------
def transformer_block_kernel(
    x_ref,
    ln1w_ref, ln1b_ref,
    wqkv_ref, bqkv_ref,
    wo_ref, bo_ref,
    ln2w_ref, ln2b_ref,
    w1_ref, b1_ref, w2_ref, b2_ref,
    o_ref,
    ctx_ref,                                   # VMEM scratch: (bb*S, E) f32 attention context
    *, n_heads: int, seq_len: int, approx_recip: bool,
):
    x = x_ref[...].astype(jnp.float32)         # (R, E), R = batches_in_block * S
    R, E = x.shape
    S = seq_len
    n_b = R // S
    hd = E // n_heads
    scale = 1.0 / math.sqrt(hd)

    # ---- attention branch -------------------------------------------------
    h = _layernorm(x, ln1w_ref[0], ln1b_ref[0])

    # Fused QKV projection: one MXU sequence; columns are [ Q | K | V ].
    qkv = jnp.dot(h, wqkv_ref[...], preferred_element_type=jnp.float32) + bqkv_ref[0]

    row = lax.broadcasted_iota(jnp.int32, (S, S), 0)
    col = lax.broadcasted_iota(jnp.int32, (S, S), 1)
    causal = col <= row
    neg_big = jnp.float32(-1e30)   # finite mask fill: robust even if a row were fully masked

    # TODO(synk): at scaled B/H convert these static Python loops to
    # lax.fori_loop(..., unroll=True) or a grid axis to bound vreg live ranges.
    for b in range(n_b):                       # static: batches folded into this block
        r0 = b * S
        for hh in range(n_heads):              # static: tiny per-head tiles
            c0 = hh * hd
            qh = qkv[r0:r0 + S, c0:c0 + hd]
            kh = qkv[r0:r0 + S, E + c0:E + c0 + hd]
            vh = qkv[r0:r0 + S, 2 * E + c0:2 * E + c0 + hd]
            # trans_b contraction on the MXU: no explicit transpose of kh.
            s = lax.dot_general(qh, kh, (((1,), (1,)), ((), ())),
                                preferred_element_type=jnp.float32) * scale
            s = jnp.where(causal, s, neg_big)
            m = jnp.max(s, axis=-1, keepdims=True)
            p = jnp.exp(s - m)
            denom = jnp.sum(p, axis=-1, keepdims=True)
            if approx_recip:
                p = p * pl.reciprocal(denom, approx=True)     # EUP, not a VALU divide
            else:
                p = p / denom
            ctx_h = jnp.dot(p, vh, preferred_element_type=jnp.float32)       # (S, hd)
            # Assemble context in VMEM scratch at lane offset hh*hd (plain stores),
            # so the output projection below is ONE matmul and no concat exists.
            ctx_ref[r0:r0 + S, c0:c0 + hd] = ctx_h

    att = jnp.dot(ctx_ref[...], wo_ref[...], preferred_element_type=jnp.float32) + bo_ref[0]
    x = x + att                                # drop_shortcut == identity (drop_rate = 0)

    # ---- feed-forward branch ----------------------------------------------
    h = _layernorm(x, ln2w_ref[0], ln2b_ref[0])
    # TODO(synk): at scaled configs cast matmul operands to bf16 (f32 accum), tile the
    # 4E intermediate / weights, and switch attention to a flash-style (tq, tk) loop with
    # an explicit vmem_limit_bytes budget (mandatory for v7x's 64 MiB VMEM).
    h1 = jnp.dot(h, w1_ref[...], preferred_element_type=jnp.float32) + b1_ref[0]
    h1 = _gelu_tanh(h1)
    h2 = jnp.dot(h1, w2_ref[...], preferred_element_type=jnp.float32) + b2_ref[0]
    x = x + h2                                 # drop_shortcut == identity

    o_ref[...] = x.astype(o_ref.dtype)


# ----------------------------- wrapper ---------------------------------------
def _two_tensorcores():
    # v7x exposes 2 TensorCores per chip (megacore-style); v5e/v6e have 1.
    # Heuristic only: a mismatch falls back to the single-block path (safe default).
    try:
        kind = jax.devices()[0].device_kind.lower()
    except Exception:
        return False
    return "v7" in kind


def fuse_params(params, n_heads):
    """One-time (init-style) repack of the PyTorch-layout params for the kernel."""
    (ln1w, ln1b, wq, bq, wk, bk, wv, bv, wo, bo,
     ln2w, ln2b, w1, b1, w2, b2) = params
    wqkv = jnp.concatenate([wq, wk, wv], axis=1)      # (E, 3E)
    bqkv = jnp.concatenate([bq, bk, bv], axis=1)      # (1, 3E)
    return (ln1w, ln1b, wqkv, bqkv, wo, bo, ln2w, ln2b, w1, b1, w2, b2)


def transformer_block(x, fused_params, n_heads, drop_rate=0.0, approx_recip=True):
    assert drop_rate == 0.0, "kernel implements eval semantics: dropout == identity"
    B, S, E = x.shape

    # v5e/v6e (1 TC): fold the whole batch into one grid step (fuller MXU rows, one
    # per-step overhead).  v7x (2 TCs): only shard batch across cores once each core
    # gets a non-trivial MXU block (>=128 rows); otherwise splitting just duplicates
    # weight residency and per-step pipeline overhead.
    groups = 2 if (_two_tensorcores() and B % 2 == 0 and (B // 2) * S >= 128) else 1
    bb = B // groups                                  # batch elements per grid step

    x2d = x.reshape(B * S, E)                         # fold batch into rows (layout no-op)

    def const_spec(arr):
        nd = arr.ndim
        # TODO(synk): at scaled E, single-buffer these constants (pipeline_mode=pl.Buffered(1))
        # or keep big weights in pl.ANY and stream K-tiles manually to halve weight VMEM.
        return pl.BlockSpec(arr.shape, lambda g, _nd=nd: (0,) * _nd)

    in_specs = [pl.BlockSpec((bb * S, E), lambda g: (g, 0))]
    in_specs += [const_spec(p) for p in fused_params]

    # Advisory cost estimate so XLA can schedule the custom call inside a larger model.
    hd = E // n_heads
    flops = (2 * B * S * E * 3 * E                 # fused QKV
             + 4 * B * n_heads * S * S * hd        # scores + context
             + 2 * B * S * E * E                   # output projection
             + 4 * B * S * E * 4 * E)              # MLP (two matmuls)
    transcendentals = B * n_heads * S * S + B * S * 4 * E + 4 * B * S
    bytes_accessed = 4 * (2 * B * S * E + E * 3 * E + E * E + 8 * E * E + 14 * E)

    out2d = pl.pallas_call(
        partial(transformer_block_kernel, n_heads=n_heads, seq_len=S,
                approx_recip=approx_recip),
        out_shape=jax.ShapeDtypeStruct((B * S, E), x.dtype),
        grid_spec=pltpu.PrefetchScalarGridSpec(
            num_scalar_prefetch=0,
            grid=(groups,),
            in_specs=in_specs,
            out_specs=pl.BlockSpec((bb * S, E), lambda g: (g, 0)),
            scratch_shapes=[pltpu.VMEM((bb * S, E), jnp.float32)],
        ),
        compiler_params=pltpu.CompilerParams(dimension_semantics=("parallel",)),
        cost_estimate=pl.CostEstimate(flops=flops,
                                      transcendentals=transcendentals,
                                      bytes_accessed=bytes_accessed),
    )(x2d, *fused_params)
    return out2d.reshape(B, S, E)


# ----------------------------- reference (pure JAX) --------------------------
def transformer_block_ref(x, params, n_heads):
    (ln1w, ln1b, wq, bq, wk, bk, wv, bv, wo, bo,
     ln2w, ln2b, w1, b1, w2, b2) = params
    B, S, E = x.shape
    hd = E // n_heads

    def ln(z, w, b):
        mu = jnp.mean(z, -1, keepdims=True)
        var = jnp.mean((z - mu) ** 2, -1, keepdims=True)
        return (z - mu) / jnp.sqrt(var + LN_EPS) * w[0] + b[0]

    h = ln(x, ln1w, ln1b)
    q = h @ wq + bq[0]
    k = h @ wk + bk[0]
    v = h @ wv + bv[0]
    q = q.reshape(B, S, n_heads, hd).transpose(0, 2, 1, 3)
    k = k.reshape(B, S, n_heads, hd).transpose(0, 2, 1, 3)
    v = v.reshape(B, S, n_heads, hd).transpose(0, 2, 1, 3)
    s = jnp.einsum("bhqd,bhkd->bhqk", q, k) / math.sqrt(hd)
    mask = jnp.tril(jnp.ones((S, S), bool))
    s = jnp.where(mask, s, -jnp.inf)
    p = jax.nn.softmax(s, axis=-1)
    ctx = jnp.einsum("bhqk,bhkd->bhqd", p, v).transpose(0, 2, 1, 3).reshape(B, S, E)
    x = x + (ctx @ wo + bo[0])

    h = ln(x, ln2w, ln2b)
    h1 = h @ w1 + b1[0]
    c = math.sqrt(2.0 / math.pi)
    h1 = 0.5 * h1 * (1.0 + jnp.tanh(c * (h1 + 0.044715 * h1 ** 3)))
    x = x + (h1 @ w2 + b2[0])
    return x


# ----------------------------- main ------------------------------------------
if __name__ == "__main__":
    B, S = 2, CFG["context_length"]
    E, H = CFG["emb_dim"], CFG["n_heads"]

    key = jax.random.PRNGKey(0)
    keys = jax.random.split(key, 16)
    f32 = jnp.float32

    x = jax.random.normal(keys[0], (B, S, E), f32)

    def w(k, shape, scale=0.02):
        return (scale * jax.random.normal(k, shape)).astype(f32)

    params = (
        jnp.ones((1, E), f32), jnp.zeros((1, E), f32),        # ln1 weight, bias
        w(keys[1], (E, E)), w(keys[2], (1, E)),               # Wq, bq
        w(keys[3], (E, E)), w(keys[4], (1, E)),               # Wk, bk
        w(keys[5], (E, E)), w(keys[6], (1, E)),               # Wv, bv
        w(keys[7], (E, E)), jnp.zeros((1, E), f32),           # Wo, bo
        jnp.ones((1, E), f32), jnp.zeros((1, E), f32),        # ln2 weight, bias
        w(keys[8], (E, 4 * E)), jnp.zeros((1, 4 * E), f32),   # W1, b1
        w(keys[9], (4 * E, E)), jnp.zeros((1, E), f32),       # W2, b2
    )

    fused = fuse_params(params, H)

    out = transformer_block(x, fused, H, drop_rate=CFG["drop_rate"])
    out = jax.block_until_ready(out)

    ref = transformer_block_ref(x, params, H)
    assert out.shape == (B, S, E)
    # Tolerance loosened vs exact f32 because the softmax denominator uses the
    # hardware approximate reciprocal (EUP).
    assert jnp.allclose(out, ref, rtol=2e-3, atol=2e-3), (
        float(jnp.max(jnp.abs(out - ref))))

    print("KERNEL_OK")
</pallas_src>

<mosaic_0001>
module attributes {stable_mosaic.version = 11 : i64} {
  func.func @transformer_block_kernel(%arg0: i32, %arg1: memref<16x32xf32, #tpu.memory_space<vmem>>, %arg2: memref<1x32xf32, #tpu.memory_space<vmem>>, %arg3: memref<1x32xf32, #tpu.memory_space<vmem>>, %arg4: memref<32x96xf32, #tpu.memory_space<vmem>>, %arg5: memref<1x96xf32, #tpu.memory_space<vmem>>, %arg6: memref<32x32xf32, #tpu.memory_space<vmem>>, %arg7: memref<1x32xf32, #tpu.memory_space<vmem>>, %arg8: memref<1x32xf32, #tpu.memory_space<vmem>>, %arg9: memref<1x32xf32, #tpu.memory_space<vmem>>, %arg10: memref<32x128xf32, #tpu.memory_space<vmem>>, %arg11: memref<1x128xf32, #tpu.memory_space<vmem>>, %arg12: memref<128x32xf32, #tpu.memory_space<vmem>>, %arg13: memref<1x32xf32, #tpu.memory_space<vmem>>, %arg14: memref<16x32xf32, #tpu.memory_space<vmem>>, %arg15: memref<16x32xf32, #tpu.memory_space<vmem>>) attributes {dimension_semantics = [#tpu.dimension_semantics<parallel>], iteration_bounds = array<i64: 1>, scalar_prefetch = 0 : i64, scratch_operands = 1 : i64, tpu.core_type = #tpu.core_type<tc>, window_params = [{transform_indices = @transform_0, window_bounds = array<i64: 16, 32>}, {pipeline_mode = #tpu.pipeline_mode<synchronous>, transform_indices = @transform_1, window_bounds = array<i64: 1, 32>}, {pipeline_mode = #tpu.pipeline_mode<synchronous>, transform_indices = @transform_2, window_bounds = array<i64: 1, 32>}, {pipeline_mode = #tpu.pipeline_mode<synchronous>, transform_indices = @transform_3, window_bounds = array<i64: 32, 96>}, {pipeline_mode = #tpu.pipeline_mode<synchronous>, transform_indices = @transform_4, window_bounds = array<i64: 1, 96>}, {pipeline_mode = #tpu.pipeline_mode<synchronous>, transform_indices = @transform_5, window_bounds = array<i64: 32, 32>}, {pipeline_mode = #tpu.pipeline_mode<synchronous>, transform_indices = @transform_6, window_bounds = array<i64: 1, 32>}, {pipeline_mode = #tpu.pipeline_mode<synchronous>, transform_indices = @transform_7, window_bounds = array<i64: 1, 32>}, {pipeline_mode = #tpu.pipeline_mode<synchronous>, transform_indices = @transform_8, window_bounds = array<i64: 1, 32>}, {pipeline_mode = #tpu.pipeline_mode<synchronous>, transform_indices = @transform_9, window_bounds = array<i64: 32, 128>}, {pipeline_mode = #tpu.pipeline_mode<synchronous>, transform_indices = @transform_10, window_bounds = array<i64: 1, 128>}, {pipeline_mode = #tpu.pipeline_mode<synchronous>, transform_indices = @transform_11, window_bounds = array<i64: 128, 32>}, {pipeline_mode = #tpu.pipeline_mode<synchronous>, transform_indices = @transform_12, window_bounds = array<i64: 1, 32>}, {transform_indices = @transform_13, window_bounds = array<i64: 16, 32>}]} {
    %c0 = arith.constant 0 : index
    %c0_0 = arith.constant 0 : index
    %0 = vector.load %arg1[%c0, %c0_0] : memref<16x32xf32, #tpu.memory_space<vmem>>, vector<16x32xf32>
    %c0_1 = arith.constant 0 : index
    %c0_2 = arith.constant 0 : index
    %1 = vector.load %arg2[%c0_1, %c0_2] : memref<1x32xf32, #tpu.memory_space<vmem>>, vector<1x32xf32>
    %2 = vector.shape_cast %1 : vector<1x32xf32> to vector<32xf32>
    %c0_3 = arith.constant 0 : index
    %c0_4 = arith.constant 0 : index
    %3 = vector.load %arg3[%c0_3, %c0_4] : memref<1x32xf32, #tpu.memory_space<vmem>>, vector<1x32xf32>
    %4 = vector.shape_cast %3 : vector<1x32xf32> to vector<32xf32>
    %cst = arith.constant dense<0.000000e+00> : vector<16xf32>
    %5 = vector.multi_reduction <add>, %0, %cst [1] : vector<16x32xf32> to vector<16xf32>
    %6 = vector.shape_cast %5 : vector<16xf32> to vector<16x1xf32>
    %cst_5 = arith.constant 3.200000e+01 : f32
    %7 = vector.broadcast %cst_5 : f32 to vector<16x1xf32>
    %8 = arith.divf %6, %7 : vector<16x1xf32>
    %9 = vector.broadcast %8 : vector<16x1xf32> to vector<16x32xf32>
    %10 = arith.subf %0, %9 : vector<16x32xf32>
    %11 = arith.mulf %10, %10 : vector<16x32xf32>
    %cst_6 = arith.constant dense<0.000000e+00> : vector<16xf32>
    %12 = vector.multi_reduction <add>, %11, %cst_6 [1] : vector<16x32xf32> to vector<16xf32>
    %13 = vector.shape_cast %12 : vector<16xf32> to vector<16x1xf32>
    %cst_7 = arith.constant 3.200000e+01 : f32
    %14 = vector.broadcast %cst_7 : f32 to vector<16x1xf32>
    %15 = arith.divf %13, %14 : vector<16x1xf32>
    %16 = vector.broadcast %8 : vector<16x1xf32> to vector<16x32xf32>
    %17 = arith.subf %0, %16 : vector<16x32xf32>
    %cst_8 = arith.constant 9.99999974E-6 : f32
    %18 = vector.broadcast %cst_8 : f32 to vector<16x1xf32>
    %19 = arith.addf %15, %18 : vector<16x1xf32>
    %20 = math.rsqrt %19 : vector<16x1xf32>
    %21 = vector.broadcast %20 : vector<16x1xf32> to vector<16x32xf32>
    %22 = arith.mulf %17, %21 : vector<16x32xf32>
    %23 = vector.shape_cast %2 : vector<32xf32> to vector<1x32xf32>
    %24 = vector.broadcast %23 : vector<1x32xf32> to vector<16x32xf32>
    %25 = arith.mulf %22, %24 : vector<16x32xf32>
    %26 = vector.shape_cast %4 : vector<32xf32> to vector<1x32xf32>
    %27 = vector.broadcast %26 : vector<1x32xf32> to vector<16x32xf32>
    %28 = arith.addf %25, %27 : vector<16x32xf32>
    %c0_9 = arith.constant 0 : index
    %c0_10 = arith.constant 0 : index
    %29 = vector.load %arg4[%c0_9, %c0_10] : memref<32x96xf32, #tpu.memory_space<vmem>>, vector<32x96xf32>
    %cst_11 = arith.constant dense<0.000000e+00> : vector<16x96xf32>
    %30 = tpu.matmul %28, %29, %cst_11 {dimension_numbers = #tpu.dot_dimension_numbers<[1], [0], [0], [1], [0, 0, 1, 1], [], []>} : vector<16x32xf32>, vector<32x96xf32>, vector<16x96xf32> -> vector<16x96xf32>
    %c0_12 = arith.constant 0 : index
    %c0_13 = arith.constant 0 : index
    %31 = vector.load %arg5[%c0_12, %c0_13] : memref<1x96xf32, #tpu.memory_space<vmem>>, vector<1x96xf32>
    %32 = vector.shape_cast %31 : vector<1x96xf32> to vector<96xf32>
    %33 = vector.shape_cast %32 : vector<96xf32> to vector<1x96xf32>
    %34 = vector.broadcast %33 : vector<1x96xf32> to vector<16x96xf32>
    %35 = arith.addf %30, %34 : vector<16x96xf32>
    %36 = tpu.iota {dimensions = array<i32: 0>} : vector<8x8xi32>
    %37 = tpu.iota {dimensions = array<i32: 1>} : vector<8x8xi32>
    %38 = arith.cmpi sle, %37, %36 : vector<8x8xi32>
    %39 = vector.extract_strided_slice %35 {offsets = [0, 0], sizes = [8, 8], strides = [1, 1]} : vector<16x96xf32> to vector<8x8xf32>
    %40 = vector.extract_strided_slice %35 {offsets = [0, 32], sizes = [8, 8], strides = [1, 1]} : vector<16x96xf32> to vector<8x8xf32>
    %41 = vector.extract_strided_slice %35 {offsets = [0, 64], sizes = [8, 8], strides = [1, 1]} : vector<16x96xf32> to vector<8x8xf32>
    %cst_14 = arith.constant dense<0.000000e+00> : vector<8x8xf32>
    %42 = tpu.matmul %39, %40, %cst_14 {dimension_numbers = #tpu.dot_dimension_numbers<[1], [1], [0], [0], [0, 0, 1, 0], [], []>} : vector<8x8xf32>, vector<8x8xf32>, vector<8x8xf32> -> vector<8x8xf32>
    %cst_15 = arith.constant 0.353553385 : f32
    %43 = vector.broadcast %cst_15 : f32 to vector<8x8xf32>
    %44 = arith.mulf %42, %43 : vector<8x8xf32>
    %cst_16 = arith.constant -1.000000e+30 : f32
    %45 = vector.broadcast %cst_16 : f32 to vector<8x8xf32>
    %46 = arith.select %38, %44, %45 : vector<8x8xi1>, vector<8x8xf32>
    %cst_17 = arith.constant dense<0xFF800000> : vector<8xf32>
    %47 = vector.multi_reduction <maximumf>, %46, %cst_17 [1] : vector<8x8xf32> to vector<8xf32>
    %48 = vector.shape_cast %47 : vector<8xf32> to vector<8x1xf32>
    %49 = vector.broadcast %48 : vector<8x1xf32> to vector<8x8xf32>
    %50 = arith.subf %46, %49 : vector<8x8xf32>
    %51 = math.exp %50 : vector<8x8xf32>
    %cst_18 = arith.constant dense<0.000000e+00> : vector<8xf32>
    %52 = vector.multi_reduction <add>, %51, %cst_18 [1] : vector<8x8xf32> to vector<8xf32>
    %53 = vector.shape_cast %52 : vector<8xf32> to vector<8x1xf32>
    %54 = tpu.reciprocal %53 {approx = true} : vector<8x1xf32> -> vector<8x1xf32>
    %55 = vector.broadcast %54 : vector<8x1xf32> to vector<8x8xf32>
    %56 = arith.mulf %51, %55 : vector<8x8xf32>
    %cst_19 = arith.constant dense<0.000000e+00> : vector<8x8xf32>
    %57 = tpu.matmul %56, %41, %cst_19 {dimension_numbers = #tpu.dot_dimension_numbers<[1], [0], [0], [1], [0, 0, 1, 1], [], []>} : vector<8x8xf32>, vector<8x8xf32>, vector<8x8xf32> -> vector<8x8xf32>
    %c0_20 = arith.constant 0 : index
    %c0_21 = arith.constant 0 : index
    %58 = vector.load %arg15[%c0_20, %c0_21] : memref<16x32xf32, #tpu.memory_space<vmem>>, vector<8x8xf32>
    tpu.vector_store %arg15[%c0_20, %c0_21], %57 {strides = array<i32>} : memref<16x32xf32, #tpu.memory_space<vmem>>, vector<8x8xf32>,
    %59 = vector.extract_strided_slice %35 {offsets = [0, 8], sizes = [8, 8], strides = [1, 1]} : vector<16x96xf32> to vector<8x8xf32>
    %60 = vector.extract_strided_slice %35 {offsets = [0, 40], sizes = [8, 8], strides = [1, 1]} : vector<16x96xf32> to vector<8x8xf32>
    %61 = vector.extract_strided_slice %35 {offsets = [0, 72], sizes = [8, 8], strides = [1, 1]} : vector<16x96xf32> to vector<8x8xf32>
    %cst_22 = arith.constant dense<0.000000e+00> : vector<8x8xf32>
    %62 = tpu.matmul %59, %60, %cst_22 {dimension_numbers = #tpu.dot_dimension_numbers<[1], [1], [0], [0], [0, 0, 1, 0], [], []>} : vector<8x8xf32>, vector<8x8xf32>, vector<8x8xf32> -> vector<8x8xf32>
    %cst_23 = arith.constant 0.353553385 : f32
    %63 = vector.broadcast %cst_23 : f32 to vector<8x8xf32>
    %64 = arith.mulf %62, %63 : vector<8x8xf32>
    %cst_24 = arith.constant -1.000000e+30 : f32
    %65 = vector.broadcast %cst_24 : f32 to vector<8x8xf32>
    %66 = arith.select %38, %64, %65 : vector<8x8xi1>, vector<8x8xf32>
    %cst_25 = arith.constant dense<0xFF800000> : vector<8xf32>
    %67 = vector.multi_reduction <maximumf>, %66, %cst_25 [1] : vector<8x8xf32> to vector<8xf32>
    %68 = vector.shape_cast %67 : vector<8xf32> to vector<8x1xf32>
    %69 = vector.broadcast %68 : vector<8x1xf32> to vector<8x8xf32>
    %70 = arith.subf %66, %69 : vector<8x8xf32>
    %71 = math.exp %70 : vector<8x8xf32>
    %cst_26 = arith.constant dense<0.000000e+00> : vector<8xf32>
    %72 = vector.multi_reduction <add>, %71, %cst_26 [1] : vector<8x8xf32> to vector<8xf32>
    %73 = vector.shape_cast %72 : vector<8xf32> to vector<8x1xf32>
    %74 = tpu.reciprocal %73 {approx = true} : vector<8x1xf32> -> vector<8x1xf32>
    %75 = vector.broadcast %74 : vector<8x1xf32> to vector<8x8xf32>
    %76 = arith.mulf %71, %75 : vector<8x8xf32>
    %cst_27 = arith.constant dense<0.000000e+00> : vector<8x8xf32>
    %77 = tpu.matmul %76, %61, %cst_27 {dimension_numbers = #tpu.dot_dimension_numbers<[1], [0], [0], [1], [0, 0, 1, 1], [], []>} : vector<8x8xf32>, vector<8x8xf32>, vector<8x8xf32> -> vector<8x8xf32>
    %c0_28 = arith.constant 0 : index
    %c8 = arith.constant 8 : index
    %78 = vector.load %arg15[%c0_28, %c8] : memref<16x32xf32, #tpu.memory_space<vmem>>, vector<8x8xf32>
    tpu.vector_store %arg15[%c0_28, %c8], %77 {strides = array<i32>} : memref<16x32xf32, #tpu.memory_space<vmem>>, vector<8x8xf32>,
    %79 = vector.extract_strided_slice %35 {offsets = [0, 16], sizes = [8, 8], strides = [1, 1]} : vector<16x96xf32> to vector<8x8xf32>
    %80 = vector.extract_strided_slice %35 {offsets = [0, 48], sizes = [8, 8], strides = [1, 1]} : vector<16x96xf32> to vector<8x8xf32>
    %81 = vector.extract_strided_slice %35 {offsets = [0, 80], sizes = [8, 8], strides = [1, 1]} : vector<16x96xf32> to vector<8x8xf32>
    %cst_29 = arith.constant dense<0.000000e+00> : vector<8x8xf32>
    %82 = tpu.matmul %79, %80, %cst_29 {dimension_numbers = #tpu.dot_dimension_numbers<[1], [1], [0], [0], [0, 0, 1, 0], [], []>} : vector<8x8xf32>, vector<8x8xf32>, vector<8x8xf32> -> vector<8x8xf32>
    %cst_30 = arith.constant 0.353553385 : f32
    %83 = vector.broadcast %cst_30 : f32 to vector<8x8xf32>
    %84 = arith.mulf %82, %83 : vector<8x8xf32>
    %cst_31 = arith.constant -1.000000e+30 : f32
    %85 = vector.broadcast %cst_31 : f32 to vector<8x8xf32>
    %86 = arith.select %38, %84, %85 : vector<8x8xi1>, vector<8x8xf32>
    %cst_32 = arith.constant dense<0xFF800000> : vector<8xf32>
    %87 = vector.multi_reduction <maximumf>, %86, %cst_32 [1] : vector<8x8xf32> to vector<8xf32>
    %88 = vector.shape_cast %87 : vector<8xf32> to vector<8x1xf32>
    %89 = vector.broadcast %88 : vector<8x1xf32> to vector<8x8xf32>
    %90 = arith.subf %86, %89 : vector<8x8xf32>
    %91 = math.exp %90 : vector<8x8xf32>
    %cst_33 = arith.constant dense<0.000000e+00> : vector<8xf32>
    %92 = vector.multi_reduction <add>, %91, %cst_33 [1] : vector<8x8xf32> to vector<8xf32>
    %93 = vector.shape_cast %92 : vector<8xf32> to vector<8x1xf32>
    %94 = tpu.reciprocal %93 {approx = true} : vector<8x1xf32> -> vector<8x1xf32>
    %95 = vector.broadcast %94 : vector<8x1xf32> to vector<8x8xf32>
    %96 = arith.mulf %91, %95 : vector<8x8xf32>
    %cst_34 = arith.constant dense<0.000000e+00> : vector<8x8xf32>
    %97 = tpu.matmul %96, %81, %cst_34 {dimension_numbers = #tpu.dot_dimension_numbers<[1], [0], [0], [1], [0, 0, 1, 1], [], []>} : vector<8x8xf32>, vector<8x8xf32>, vector<8x8xf32> -> vector<8x8xf32>
    %c0_35 = arith.constant 0 : index
    %c16 = arith.constant 16 : index
    %98 = vector.load %arg15[%c0_35, %c16] : memref<16x32xf32, #tpu.memory_space<vmem>>, vector<8x8xf32>
    tpu.vector_store %arg15[%c0_35, %c16], %97 {strides = array<i32>} : memref<16x32xf32, #tpu.memory_space<vmem>>, vector<8x8xf32>,
    %99 = vector.extract_strided_slice %35 {offsets = [0, 24], sizes = [8, 8], strides = [1, 1]} : vector<16x96xf32> to vector<8x8xf32>
    %100 = vector.extract_strided_slice %35 {offsets = [0, 56], sizes = [8, 8], strides = [1, 1]} : vector<16x96xf32> to vector<8x8xf32>
    %101 = vector.extract_strided_slice %35 {offsets = [0, 88], sizes = [8, 8], strides = [1, 1]} : vector<16x96xf32> to vector<8x8xf32>
    %cst_36 = arith.constant dense<0.000000e+00> : vector<8x8xf32>
    %102 = tpu.matmul %99, %100, %cst_36 {dimension_numbers = #tpu.dot_dimension_numbers<[1], [1], [0], [0], [0, 0, 1, 0], [], []>} : vector<8x8xf32>, vector<8x8xf32>, vector<8x8xf32> -> vector<8x8xf32>
    %cst_37 = arith.constant 0.353553385 : f32
    %103 = vector.broadcast %cst_37 : f32 to vector<8x8xf32>
    %104 = arith.mulf %102, %103 : vector<8x8xf32>
    %cst_38 = arith.constant -1.000000e+30 : f32
    %105 = vector.broadcast %cst_38 : f32 to vector<8x8xf32>
    %106 = arith.select %38, %104, %105 : vector<8x8xi1>, vector<8x8xf32>
    %cst_39 = arith.constant dense<0xFF800000> : vector<8xf32>
    %107 = vector.multi_reduction <maximumf>, %106, %cst_39 [1] : vector<8x8xf32> to vector<8xf32>
    %108 = vector.shape_cast %107 : vector<8xf32> to vector<8x1xf32>
    %109 = vector.broadcast %108 : vector<8x1xf32> to vector<8x8xf32>
    %110 = arith.subf %106, %109 : vector<8x8xf32>
    %111 = math.exp %110 : vector<8x8xf32>
    %cst_40 = arith.constant dense<0.000000e+00> : vector<8xf32>
    %112 = vector.multi_reduction <add>, %111, %cst_40 [1] : vector<8x8xf32> to vector<8xf32>
    %113 = vector.shape_cast %112 : vector<8xf32> to vector<8x1xf32>
    %114 = tpu.reciprocal %113 {approx = true} : vector<8x1xf32> -> vector<8x1xf32>
    %115 = vector.broadcast %114 : vector<8x1xf32> to vector<8x8xf32>
    %116 = arith.mulf %111, %115 : vector<8x8xf32>
    %cst_41 = arith.constant dense<0.000000e+00> : vector<8x8xf32>
    %117 = tpu.matmul %116, %101, %cst_41 {dimension_numbers = #tpu.dot_dimension_numbers<[1], [0], [0], [1], [0, 0, 1, 1], [], []>} : vector<8x8xf32>, vector<8x8xf32>, vector<8x8xf32> -> vector<8x8xf32>
    %c0_42 = arith.constant 0 : index
    %c24 = arith.constant 24 : index
    %118 = vector.load %arg15[%c0_42, %c24] : memref<16x32xf32, #tpu.memory_space<vmem>>, vector<8x8xf32>
    tpu.vector_store %arg15[%c0_42, %c24], %117 {strides = array<i32>} : memref<16x32xf32, #tpu.memory_space<vmem>>, vector<8x8xf32>,
    %119 = vector.extract_strided_slice %35 {offsets = [8, 0], sizes = [8, 8], strides = [1, 1]} : vector<16x96xf32> to vector<8x8xf32>
    %120 = vector.extract_strided_slice %35 {offsets = [8, 32], sizes = [8, 8], strides = [1, 1]} : vector<16x96xf32> to vector<8x8xf32>
    %121 = vector.extract_strided_slice %35 {offsets = [8, 64], sizes = [8, 8], strides = [1, 1]} : vector<16x96xf32> to vector<8x8xf32>
    %cst_43 = arith.constant dense<0.000000e+00> : vector<8x8xf32>
    %122 = tpu.matmul %119, %120, %cst_43 {dimension_numbers = #tpu.dot_dimension_numbers<[1], [1], [0], [0], [0, 0, 1, 0], [], []>} : vector<8x8xf32>, vector<8x8xf32>, vector<8x8xf32> -> vector<8x8xf32>
    %cst_44 = arith.constant 0.353553385 : f32
    %123 = vector.broadcast %cst_44 : f32 to vector<8x8xf32>
    %124 = arith.mulf %122, %123 : vector<8x8xf32>
    %cst_45 = arith.constant -1.000000e+30 : f32
    %125 = vector.broadcast %cst_45 : f32 to vector<8x8xf32>
    %126 = arith.select %38, %124, %125 : vector<8x8xi1>, vector<8x8xf32>
    %cst_46 = arith.constant dense<0xFF800000> : vector<8xf32>
    %127 = vector.multi_reduction <maximumf>, %126, %cst_46 [1] : vector<8x8xf32> to vector<8xf32>
    %128 = vector.shape_cast %127 : vector<8xf32> to vector<8x1xf32>
    %129 = vector.broadcast %128 : vector<8x1xf32> to vector<8x8xf32>
    %130 = arith.subf %126, %129 : vector<8x8xf32>
    %131 = math.exp %130 : vector<8x8xf32>
    %cst_47 = arith.constant dense<0.000000e+00> : vector<8xf32>
    %132 = vector.multi_reduction <add>, %131, %cst_47 [1] : vector<8x8xf32> to vector<8xf32>
    %133 = vector.shape_cast %132 : vector<8xf32> to vector<8x1xf32>
    %134 = tpu.reciprocal %133 {approx = true} : vector<8x1xf32> -> vector<8x1xf32>
    %135 = vector.broadcast %134 : vector<8x1xf32> to vector<8x8xf32>
    %136 = arith.mulf %131, %135 : vector<8x8xf32>
    %cst_48 = arith.constant dense<0.000000e+00> : vector<8x8xf32>
    %137 = tpu.matmul %136, %121, %cst_48 {dimension_numbers = #tpu.dot_dimension_numbers<[1], [0], [0], [1], [0, 0, 1, 1], [], []>} : vector<8x8xf32>, vector<8x8xf32>, vector<8x8xf32> -> vector<8x8xf32>
    %c8_49 = arith.constant 8 : index
    %c0_50 = arith.constant 0 : index
    %138 = vector.load %arg15[%c8_49, %c0_50] : memref<16x32xf32, #tpu.memory_space<vmem>>, vector<8x8xf32>
    tpu.vector_store %arg15[%c8_49, %c0_50], %137 {strides = array<i32>} : memref<16x32xf32, #tpu.memory_space<vmem>>, vector<8x8xf32>,
    %139 = vector.extract_strided_slice %35 {offsets = [8, 8], sizes = [8, 8], strides = [1, 1]} : vector<16x96xf32> to vector<8x8xf32>
    %140 = vector.extract_strided_slice %35 {offsets = [8, 40], sizes = [8, 8], strides = [1, 1]} : vector<16x96xf32> to vector<8x8xf32>
    %141 = vector.extract_strided_slice %35 {offsets = [8, 72], sizes = [8, 8], strides = [1, 1]} : vector<16x96xf32> to vector<8x8xf32>
    %cst_51 = arith.constant dense<0.000000e+00> : vector<8x8xf32>
    %142 = tpu.matmul %139, %140, %cst_51 {dimension_numbers = #tpu.dot_dimension_numbers<[1], [1], [0], [0], [0, 0, 1, 0], [], []>} : vector<8x8xf32>, vector<8x8xf32>, vector<8x8xf32> -> vector<8x8xf32>
    %cst_52 = arith.constant 0.353553385 : f32
    %143 = vector.broadcast %cst_52 : f32 to vector<8x8xf32>
    %144 = arith.mulf %142, %143 : vector<8x8xf32>
    %cst_53 = arith.constant -1.000000e+30 : f32
    %145 = vector.broadcast %cst_53 : f32 to vector<8x8xf32>
    %146 = arith.select %38, %144, %145 : vector<8x8xi1>, vector<8x8xf32>
    %cst_54 = arith.constant dense<0xFF800000> : vector<8xf32>
    %147 = vector.multi_reduction <maximumf>, %146, %cst_54 [1] : vector<8x8xf32> to vector<8xf32>
    %148 = vector.shape_cast %147 : vector<8xf32> to vector<8x1xf32>
    %149 = vector.broadcast %148 : vector<8x1xf32> to vector<8x8xf32>
    %150 = arith.subf %146, %149 : vector<8x8xf32>
    %151 = math.exp %150 : vector<8x8xf32>
    %cst_55 = arith.constant dense<0.000000e+00> : vector<8xf32>
    %152 = vector.multi_reduction <add>, %151, %cst_55 [1] : vector<8x8xf32> to vector<8xf32>
    %153 = vector.shape_cast %152 : vector<8xf32> to vector<8x1xf32>
    %154 = tpu.reciprocal %153 {approx = true} : vector<8x1xf32> -> vector<8x1xf32>
    %155 = vector.broadcast %154 : vector<8x1xf32> to vector<8x8xf32>
    %156 = arith.mulf %151, %155 : vector<8x8xf32>
    %cst_56 = arith.constant dense<0.000000e+00> : vector<8x8xf32>
    %157 = tpu.matmul %156, %141, %cst_56 {dimension_numbers = #tpu.dot_dimension_numbers<[1], [0], [0], [1], [0, 0, 1, 1], [], []>} : vector<8x8xf32>, vector<8x8xf32>, vector<8x8xf32> -> vector<8x8xf32>
    %c8_57 = arith.constant 8 : index
    %c8_58 = arith.constant 8 : index
    %158 = vector.load %arg15[%c8_57, %c8_58] : memref<16x32xf32, #tpu.memory_space<vmem>>, vector<8x8xf32>
    tpu.vector_store %arg15[%c8_57, %c8_58], %157 {strides = array<i32>} : memref<16x32xf32, #tpu.memory_space<vmem>>, vector<8x8xf32>,
    %159 = vector.extract_strided_slice %35 {offsets = [8, 16], sizes = [8, 8], strides = [1, 1]} : vector<16x96xf32> to vector<8x8xf32>
    %160 = vector.extract_strided_slice %35 {offsets = [8, 48], sizes = [8, 8], strides = [1, 1]} : vector<16x96xf32> to vector<8x8xf32>
    %161 = vector.extract_strided_slice %35 {offsets = [8, 80], sizes = [8, 8], strides = [1, 1]} : vector<16x96xf32> to vector<8x8xf32>
    %cst_59 = arith.constant dense<0.000000e+00> : vector<8x8xf32>
    %162 = tpu.matmul %159, %160, %cst_59 {dimension_numbers = #tpu.dot_dimension_numbers<[1], [1], [0], [0], [0, 0, 1, 0], [], []>} : vector<8x8xf32>, vector<8x8xf32>, vector<8x8xf32> -> vector<8x8xf32>
    %cst_60 = arith.constant 0.353553385 : f32
    %163 = vector.broadcast %cst_60 : f32 to vector<8x8xf32>
    %164 = arith.mulf %162, %163 : vector<8x8xf32>
    %cst_61 = arith.constant -1.000000e+30 : f32
    %165 = vector.broadcast %cst_61 : f32 to vector<8x8xf32>
    %166 = arith.select %38, %164, %165 : vector<8x8xi1>, vector<8x8xf32>
    %cst_62 = arith.constant dense<0xFF800000> : vector<8xf32>
    %167 = vector.multi_reduction <maximumf>, %166, %cst_62 [1] : vector<8x8xf32> to vector<8xf32>
    %168 = vector.shape_cast %167 : vector<8xf32> to vector<8x1xf32>
    %169 = vector.broadcast %168 : vector<8x1xf32> to vector<8x8xf32>
    %170 = arith.subf %166, %169 : vector<8x8xf32>
    %171 = math.exp %170 : vector<8x8xf32>
    %cst_63 = arith.constant dense<0.000000e+00> : vector<8xf32>
    %172 = vector.multi_reduction <add>, %171, %cst_63 [1] : vector<8x8xf32> to vector<8xf32>
    %173 = vector.shape_cast %172 : vector<8xf32> to vector<8x1xf32>
    %174 = tpu.reciprocal %173 {approx = true} : vector<8x1xf32> -> vector<8x1xf32>
    %175 = vector.broadcast %174 : vector<8x1xf32> to vector<8x8xf32>
    %176 = arith.mulf %171, %175 : vector<8x8xf32>
    %cst_64 = arith.constant dense<0.000000e+00> : vector<8x8xf32>
    %177 = tpu.matmul %176, %161, %cst_64 {dimension_numbers = #tpu.dot_dimension_numbers<[1], [0], [0], [1], [0, 0, 1, 1], [], []>} : vector<8x8xf32>, vector<8x8xf32>, vector<8x8xf32> -> vector<8x8xf32>
    %c8_65 = arith.constant 8 : index
    %c16_66 = arith.constant 16 : index
    %178 = vector.load %arg15[%c8_65, %c16_66] : memref<16x32xf32, #tpu.memory_space<vmem>>, vector<8x8xf32>
    tpu.vector_store %arg15[%c8_65, %c16_66], %177 {strides = array<i32>} : memref<16x32xf32, #tpu.memory_space<vmem>>, vector<8x8xf32>,
    %179 = vector.extract_strided_slice %35 {offsets = [8, 24], sizes = [8, 8], strides = [1, 1]} : vector<16x96xf32> to vector<8x8xf32>
    %180 = vector.extract_strided_slice %35 {offsets = [8, 56], sizes = [8, 8], strides = [1, 1]} : vector<16x96xf32> to vector<8x8xf32>
    %181 = vector.extract_strided_slice %35 {offsets = [8, 88], sizes = [8, 8], strides = [1, 1]} : vector<16x96xf32> to vector<8x8xf32>
    %cst_67 = arith.constant dense<0.000000e+00> : vector<8x8xf32>
    %182 = tpu.matmul %179, %180, %cst_67 {dimension_numbers = #tpu.dot_dimension_numbers<[1], [1], [0], [0], [0, 0, 1, 0], [], []>} : vector<8x8xf32>, vector<8x8xf32>, vector<8x8xf32> -> vector<8x8xf32>
    %cst_68 = arith.constant 0.353553385 : f32
    %183 = vector.broadcast %cst_68 : f32 to vector<8x8xf32>
    %184 = arith.mulf %182, %183 : vector<8x8xf32>
    %cst_69 = arith.constant -1.000000e+30 : f32
    %185 = vector.broadcast %cst_69 : f32 to vector<8x8xf32>
    %186 = arith.select %38, %184, %185 : vector<8x8xi1>, vector<8x8xf32>
    %cst_70 = arith.constant dense<0xFF800000> : vector<8xf32>
    %187 = vector.multi_reduction <maximumf>, %186, %cst_70 [1] : vector<8x8xf32> to vector<8xf32>
    %188 = vector.shape_cast %187 : vector<8xf32> to vector<8x1xf32>
    %189 = vector.broadcast %188 : vector<8x1xf32> to vector<8x8xf32>
    %190 = arith.subf %186, %189 : vector<8x8xf32>
    %191 = math.exp %190 : vector<8x8xf32>
    %cst_71 = arith.constant dense<0.000000e+00> : vector<8xf32>
    %192 = vector.multi_reduction <add>, %191, %cst_71 [1] : vector<8x8xf32> to vector<8xf32>
    %193 = vector.shape_cast %192 : vector<8xf32> to vector<8x1xf32>
    %194 = tpu.reciprocal %193 {approx = true} : vector<8x1xf32> -> vector<8x1xf32>
    %195 = vector.broadcast %194 : vector<8x1xf32> to vector<8x8xf32>
    %196 = arith.mulf %191, %195 : vector<8x8xf32>
    %cst_72 = arith.constant dense<0.000000e+00> : vector<8x8xf32>
    %197 = tpu.matmul %196, %181, %cst_72 {dimension_numbers = #tpu.dot_dimension_numbers<[1], [0], [0], [1], [0, 0, 1, 1], [], []>} : vector<8x8xf32>, vector<8x8xf32>, vector<8x8xf32> -> vector<8x8xf32>
    %c8_73 = arith.constant 8 : index
    %c24_74 = arith.constant 24 : index
    %198 = vector.load %arg15[%c8_73, %c24_74] : memref<16x32xf32, #tpu.memory_space<vmem>>, vector<8x8xf32>
    tpu.vector_store %arg15[%c8_73, %c24_74], %197 {strides = array<i32>} : memref<16x32xf32, #tpu.memory_space<vmem>>, vector<8x8xf32>,
    %c0_75 = arith.constant 0 : index
    %c0_76 = arith.constant 0 : index
    %199 = vector.load %arg15[%c0_75, %c0_76] : memref<16x32xf32, #tpu.memory_space<vmem>>, vector<16x32xf32>
    %c0_77 = arith.constant 0 : index
    %c0_78 = arith.constant 0 : index
    %200 = vector.load %arg6[%c0_77, %c0_78] : memref<32x32xf32, #tpu.memory_space<vmem>>, vector<32x32xf32>
    %cst_79 = arith.constant dense<0.000000e+00> : vector<16x32xf32>
    %201 = tpu.matmul %199, %200, %cst_79 {dimension_numbers = #tpu.dot_dimension_numbers<[1], [0], [0], [1], [0, 0, 1, 1], [], []>} : vector<16x32xf32>, vector<32x32xf32>, vector<16x32xf32> -> vector<16x32xf32>
    %c0_80 = arith.constant 0 : index
    %c0_81 = arith.constant 0 : index
    %202 = vector.load %arg7[%c0_80, %c0_81] : memref<1x32xf32, #tpu.memory_space<vmem>>, vector<1x32xf32>
    %203 = vector.shape_cast %202 : vector<1x32xf32> to vector<32xf32>
    %204 = vector.shape_cast %203 : vector<32xf32> to vector<1x32xf32>
    %205 = vector.broadcast %204 : vector<1x32xf32> to vector<16x32xf32>
    %206 = arith.addf %201, %205 : vector<16x32xf32>
    %207 = arith.addf %0, %206 : vector<16x32xf32>
    %c0_82 = arith.constant 0 : index
    %c0_83 = arith.constant 0 : index
    %208 = vector.load %arg8[%c0_82, %c0_83] : memref<1x32xf32, #tpu.memory_space<vmem>>, vector<1x32xf32>
    %209 = vector.shape_cast %208 : vector<1x32xf32> to vector<32xf32>
    %c0_84 = arith.constant 0 : index
    %c0_85 = arith.constant 0 : index
    %210 = vector.load %arg9[%c0_84, %c0_85] : memref<1x32xf32, #tpu.memory_space<vmem>>, vector<1x32xf32>
    %211 = vector.shape_cast %210 : vector<1x32xf32> to vector<32xf32>
    %cst_86 = arith.constant dense<0.000000e+00> : vector<16xf32>
    %212 = vector.multi_reduction <add>, %207, %cst_86 [1] : vector<16x32xf32> to vector<16xf32>
    %213 = vector.shape_cast %212 : vector<16xf32> to vector<16x1xf32>
    %cst_87 = arith.constant 3.200000e+01 : f32
    %214 = vector.broadcast %cst_87 : f32 to vector<16x1xf32>
    %215 = arith.divf %213, %214 : vector<16x1xf32>
    %216 = vector.broadcast %215 : vector<16x1xf32> to vector<16x32xf32>
    %217 = arith.subf %207, %216 : vector<16x32xf32>
    %218 = arith.mulf %217, %217 : vector<16x32xf32>
    %cst_88 = arith.constant dense<0.000000e+00> : vector<16xf32>
    %219 = vector.multi_reduction <add>, %218, %cst_88 [1] : vector<16x32xf32> to vector<16xf32>
    %220 = vector.shape_cast %219 : vector<16xf32> to vector<16x1xf32>
    %cst_89 = arith.constant 3.200000e+01 : f32
    %221 = vector.broadcast %cst_89 : f32 to vector<16x1xf32>
    %222 = arith.divf %220, %221 : vector<16x1xf32>
    %223 = vector.broadcast %215 : vector<16x1xf32> to vector<16x32xf32>
    %224 = arith.subf %207, %223 : vector<16x32xf32>
    %cst_90 = arith.constant 9.99999974E-6 : f32
    %225 = vector.broadcast %cst_90 : f32 to vector<16x1xf32>
    %226 = arith.addf %222, %225 : vector<16x1xf32>
    %227 = math.rsqrt %226 : vector<16x1xf32>
    %228 = vector.broadcast %227 : vector<16x1xf32> to vector<16x32xf32>
    %229 = arith.mulf %224, %228 : vector<16x32xf32>
    %230 = vector.shape_cast %209 : vector<32xf32> to vector<1x32xf32>
    %231 = vector.broadcast %230 : vector<1x32xf32> to vector<16x32xf32>
    %232 = arith.mulf %229, %231 : vector<16x32xf32>
    %233 = vector.shape_cast %211 : vector<32xf32> to vector<1x32xf32>
    %234 = vector.broadcast %233 : vector<1x32xf32> to vector<16x32xf32>
    %235 = arith.addf %232, %234 : vector<16x32xf32>
    %c0_91 = arith.constant 0 : index
    %c0_92 = arith.constant 0 : index
    %236 = vector.load %arg10[%c0_91, %c0_92] : memref<32x128xf32, #tpu.memory_space<vmem>>, vector<32x128xf32>
    %cst_93 = arith.constant dense<0.000000e+00> : vector<16x128xf32>
    %237 = tpu.matmul %235, %236, %cst_93 {dimension_numbers = #tpu.dot_dimension_numbers<[1], [0], [0], [1], [0, 0, 1, 1], [], []>} : vector<16x32xf32>, vector<32x128xf32>, vector<16x128xf32> -> vector<16x128xf32>
    %c0_94 = arith.constant 0 : index
    %c0_95 = arith.constant 0 : index
    %238 = vector.load %arg11[%c0_94, %c0_95] : memref<1x128xf32, #tpu.memory_space<vmem>>, vector<1x128xf32>
    %239 = vector.shape_cast %238 : vector<1x128xf32> to vector<128xf32>
    %240 = vector.shape_cast %239 : vector<128xf32> to vector<1x128xf32>
    %241 = vector.broadcast %240 : vector<1x128xf32> to vector<16x128xf32>
    %242 = arith.addf %237, %241 : vector<16x128xf32>
    %cst_96 = arith.constant 5.000000e-01 : f32
    %243 = vector.broadcast %cst_96 : f32 to vector<16x128xf32>
    %244 = arith.mulf %243, %242 : vector<16x128xf32>
    %cst_97 = arith.constant 4.471500e-02 : f32
    %245 = vector.broadcast %cst_97 : f32 to vector<16x128xf32>
    %246 = arith.mulf %245, %242 : vector<16x128xf32>
    %247 = arith.mulf %246, %242 : vector<16x128xf32>
    %248 = arith.mulf %247, %242 : vector<16x128xf32>
    %249 = arith.addf %242, %248 : vector<16x128xf32>
    %cst_98 = arith.constant 0.797884583 : f32
    %250 = vector.broadcast %cst_98 : f32 to vector<16x128xf32>
    %251 = arith.mulf %250, %249 : vector<16x128xf32>
    %252 = math.tanh %251 : vector<16x128xf32>
    %cst_99 = arith.constant 1.000000e+00 : f32
    %253 = vector.broadcast %cst_99 : f32 to vector<16x128xf32>
    %254 = arith.addf %253, %252 : vector<16x128xf32>
    %255 = arith.mulf %244, %254 : vector<16x128xf32>
    %c0_100 = arith.constant 0 : index
    %c0_101 = arith.constant 0 : index
    %256 = vector.load %arg12[%c0_100, %c0_101] : memref<128x32xf32, #tpu.memory_space<vmem>>, vector<128x32xf32>
    %cst_102 = arith.constant dense<0.000000e+00> : vector<16x32xf32>
    %257 = tpu.matmul %255, %256, %cst_102 {dimension_numbers = #tpu.dot_dimension_numbers<[1], [0], [0], [1], [0, 0, 1, 1], [], []>} : vector<16x128xf32>, vector<128x32xf32>, vector<16x32xf32> -> vector<16x32xf32>
    %c0_103 = arith.constant 0 : index
    %c0_104 = arith.constant 0 : index
    %258 = vector.load %arg13[%c0_103, %c0_104] : memref<1x32xf32, #tpu.memory_space<vmem>>, vector<1x32xf32>
    %259 = vector.shape_cast %258 : vector<1x32xf32> to vector<32xf32>
    %260 = vector.shape_cast %259 : vector<32xf32> to vector<1x32xf32>
    %261 = vector.broadcast %260 : vector<1x32xf32> to vector<16x32xf32>
    %262 = arith.addf %257, %261 : vector<16x32xf32>
    %263 = arith.addf %207, %262 : vector<16x32xf32>
    %c0_105 = arith.constant 0 : index
    %c0_106 = arith.constant 0 : index
    %264 = vector.load %arg14[%c0_105, %c0_106] : memref<16x32xf32, #tpu.memory_space<vmem>>, vector<16x32xf32>
    tpu.vector_store %arg14[%c0_105, %c0_106], %263 {strides = array<i32>} : memref<16x32xf32, #tpu.memory_space<vmem>>, vector<16x32xf32>,
    return
  }
  func.func @transform_0(%arg0: i32) -> (i32, i32) {
    %c0_i32 = arith.constant 0 : i32
    %c0_i32_0 = arith.constant 0 : i32
    return %arg0, %c0_i32 : i32, i32
  }
  func.func @transform_1(%arg0: i32) -> (i32, i32) {
    %c0_i32 = arith.constant 0 : i32
    %c0_i32_0 = arith.constant 0 : i32
    %c0_i32_1 = arith.constant 0 : i32
    return %c0_i32, %c0_i32_0 : i32, i32
  }
  func.func @transform_2(%arg0: i32) -> (i32, i32) {
    %c0_i32 = arith.constant 0 : i32
    %c0_i32_0 = arith.constant 0 : i32
    %c0_i32_1 = arith.constant 0 : i32
    return %c0_i32, %c0_i32_0 : i32, i32
  }
  func.func @transform_3(%arg0: i32) -> (i32, i32) {
    %c0_i32 = arith.constant 0 : i32
    %c0_i32_0 = arith.constant 0 : i32
    %c0_i32_1 = arith.constant 0 : i32
    return %c0_i32, %c0_i32_0 : i32, i32
  }
  func.func @transform_4(%arg0: i32) -> (i32, i32) {
    %c0_i32 = arith.constant 0 : i32
    %c0_i32_0 = arith.constant 0 : i32
    %c0_i32_1 = arith.constant 0 : i32
    return %c0_i32, %c0_i32_0 : i32, i32
  }
  func.func @transform_5(%arg0: i32) -> (i32, i32) {
    %c0_i32 = arith.constant 0 : i32
    %c0_i32_0 = arith.constant 0 : i32
    %c0_i32_1 = arith.constant 0 : i32
    return %c0_i32, %c0_i32_0 : i32, i32
  }
  func.func @transform_6(%arg0: i32) -> (i32, i32) {
    %c0_i32 = arith.constant 0 : i32
    %c0_i32_0 = arith.constant 0 : i32
    %c0_i32_1 = arith.constant 0 : i32
    return %c0_i32, %c0_i32_0 : i32, i32
  }
  func.func @transform_7(%arg0: i32) -> (i32, i32) {
    %c0_i32 = arith.constant 0 : i32
    %c0_i32_0 = arith.constant 0 : i32
    %c0_i32_1 = arith.constant 0 : i32
    return %c0_i32, %c0_i32_0 : i32, i32
  }
  func.func @transform_8(%arg0: i32) -> (i32, i32) {
    %c0_i32 = arith.constant 0 : i32
    %c0_i32_0 = arith.constant 0 : i32
    %c0_i32_1 = arith.constant 0 : i32
    return %c0_i32, %c0_i32_0 : i32, i32
  }
  func.func @transform_9(%arg0: i32) -> (i32, i32) {
    %c0_i32 = arith.constant 0 : i32
    %c0_i32_0 = arith.constant 0 : i32
    %c0_i32_1 = arith.constant 0 : i32
    return %c0_i32, %c0_i32_0 : i32, i32
  }
  func.func @transform_10(%arg0: i32) -> (i32, i32) {
    %c0_i32 = arith.constant 0 : i32
    %c0_i32_0 = arith.constant 0 : i32
    %c0_i32_1 = arith.constant 0 : i32
    return %c0_i32, %c0_i32_0 : i32, i32
  }
  func.func @transform_11(%arg0: i32) -> (i32, i32) {
    %c0_i32 = arith.constant 0 : i32
    %c0_i32_0 = arith.constant 0 : i32
    %c0_i32_1 = arith.constant 0 : i32
    return %c0_i32, %c0_i32_0 : i32, i32
  }
  func.func @transform_12(%arg0: i32) -> (i32, i32) {
    %c0_i32 = arith.constant 0 : i32
    %c0_i32_0 = arith.constant 0 : i32
    %c0_i32_1 = arith.constant 0 : i32
    return %c0_i32, %c0_i32_0 : i32, i32
  }
  func.func @transform_13(%arg0: i32) -> (i32, i32) {
    %c0_i32 = arith.constant 0 : i32
    %c0_i32_0 = arith.constant 0 : i32
    return %arg0, %c0_i32 : i32, i32
  }
}

</mosaic_0001>

<llo_original>
// kernel: tpu_custom_call.1
$region0: #{tpu_custom_call.1}
  #allocation0 [shape = 'u32[]', space=smem, size = 0x4, offset = 0x4, fixed_abs, tag = 'smem constant byte address 0x4 - core index']
  #allocation1 [shape = 'u32[144,128]{1,0:T(1,128)}', space=vmem, size = 0x12000, scoped, tag = 'internal scratch']
  #allocation2 [shape = 'f32[16,32]{1,0:T(8,128)}', space=vmem, size = 0x2000, scoped, tag = 'scratch operand']
  %s0 = inlined_call_operand.vmem [shape: f32[16,32], index: 0, kind: input, shape index: {}]
  %s1 = inlined_call_operand.vmem [shape: f32[1,32], index: 1, kind: input, shape index: {}]
  %s2 = inlined_call_operand.vmem [shape: f32[1,32], index: 2, kind: input, shape index: {}]
  %s3 = inlined_call_operand.vmem [shape: f32[32,96], index: 3, kind: input, shape index: {}]
  %s4 = inlined_call_operand.vmem [shape: f32[1,96], index: 4, kind: input, shape index: {}]
  %s5 = inlined_call_operand.vmem [shape: f32[32,32], index: 5, kind: input, shape index: {}]
  %s6 = inlined_call_operand.vmem [shape: f32[1,32], index: 6, kind: input, shape index: {}]
  %s7 = inlined_call_operand.vmem [shape: f32[1,32], index: 7, kind: input, shape index: {}]
  %s8 = inlined_call_operand.vmem [shape: f32[1,32], index: 8, kind: input, shape index: {}]
  %s9 = inlined_call_operand.vmem [shape: f32[32,128], index: 9, kind: input, shape index: {}]
  %s10 = inlined_call_operand.vmem [shape: f32[1,128], index: 10, kind: input, shape index: {}]
  %s11 = inlined_call_operand.vmem [shape: f32[128,32], index: 11, kind: input, shape index: {}]
  %s12 = inlined_call_operand.vmem [shape: f32[1,32], index: 12, kind: input, shape index: {}]
  %s13 = inlined_call_operand.hbm [shape: f32[16,32], index: 13, kind: output, shape index: {}]
  %s14 = sld [smem:[#allocation0]]
  $region62: #{tpu_custom_call.1} parent=0
    _
  %s16 = ssub.s32 1, %s14
  %s17 = scalar_select 0, %s16, %s14
  $region1: #{tpu_custom_call.1} parent=0
    #allocation3 [shape = 'u8[8192]{0}', space=vmem, size = 0x2000, scoped, tag = 'output window, operand 0, single buffered']
    #allocation4 [shape = 's32[1]{0}', space=sflag, size = 0x4, scoped, tag = 'scoped memory for tpu_custom_call.1']
    %18 = vsyncpa [#allocation4], 0
    // Predicated region
    $region2: #{tpu_custom_call.1} parent=1 // pred_check
      _
    $region3: #{tpu_custom_call.1} parent=1 // pred_check_branch
      %20 = sbr.rel (0) target = $region5
    $region4: #{tpu_custom_call.1} parent=1 // pred_region
      _
    $region5: #{tpu_custom_call.1} parent=1 // pred_fallthru
      _
    // Predicated region
    $region6: #{tpu_custom_call.1} parent=1 // pred_check
      _
    $region7: #{tpu_custom_call.1} parent=1 // pred_check_branch
      %22 = sbr.rel (0) target = $region9
    $region8: #{tpu_custom_call.1} parent=1 // pred_region
      _
    $region9: #{tpu_custom_call.1} parent=1 // pred_fallthru
      _
    // Predicated region
    $region10: #{tpu_custom_call.1} parent=1 // pred_check
      _
    $region11: #{tpu_custom_call.1} parent=1 // pred_check_branch
      %24 = sbr.rel (0) target = $region13
    $region12: #{tpu_custom_call.1} parent=1 // pred_region
      _
    $region13: #{tpu_custom_call.1} parent=1 // pred_fallthru
      _
    // Predicated region
    $region14: #{tpu_custom_call.1} parent=1 // pred_check
      _
    $region15: #{tpu_custom_call.1} parent=1 // pred_check_branch
      %26 = sbr.rel (0) target = $region17
    $region16: #{tpu_custom_call.1} parent=1 // pred_region
      _
    $region17: #{tpu_custom_call.1} parent=1 // pred_fallthru
      _
    // Predicated region
    $region18: #{tpu_custom_call.1} parent=1 // pred_check
      _
    $region19: #{tpu_custom_call.1} parent=1 // pred_check_branch
      %28 = sbr.rel (0) target = $region21
    $region20: #{tpu_custom_call.1} parent=1 // pred_region
      _
    $region21: #{tpu_custom_call.1} parent=1 // pred_fallthru
      _
    // Predicated region
    $region22: #{tpu_custom_call.1} parent=1 // pred_check
      _
    $region23: #{tpu_custom_call.1} parent=1 // pred_check_branch
      %30 = sbr.rel (0) target = $region25
    $region24: #{tpu_custom_call.1} parent=1 // pred_region
      _
    $region25: #{tpu_custom_call.1} parent=1 // pred_fallthru
      _
    // Predicated region
    $region26: #{tpu_custom_call.1} parent=1 // pred_check
      _
    $region27: #{tpu_custom_call.1} parent=1 // pred_check_branch
      %32 = sbr.rel (0) target = $region29
    $region28: #{tpu_custom_call.1} parent=1 // pred_region
      _
    $region29: #{tpu_custom_call.1} parent=1 // pred_fallthru
      _
    // Predicated region
    $region30: #{tpu_custom_call.1} parent=1 // pred_check
      _
    $region31: #{tpu_custom_call.1} parent=1 // pred_check_branch
      %34 = sbr.rel (0) target = $region33
    $region32: #{tpu_custom_call.1} parent=1 // pred_region
      _
    $region33: #{tpu_custom_call.1} parent=1 // pred_fallthru
      _
    // Predicated region
    $region34: #{tpu_custom_call.1} parent=1 // pred_check
      _
    $region35: #{tpu_custom_call.1} parent=1 // pred_check_branch
      %36 = sbr.rel (0) target = $region37
    $region36: #{tpu_custom_call.1} parent=1 // pred_region
      _
    $region37: #{tpu_custom_call.1} parent=1 // pred_fallthru
      _
    // Predicated region
    $region38: #{tpu_custom_call.1} parent=1 // pred_check
      _
    $region39: #{tpu_custom_call.1} parent=1 // pred_check_branch
      %38 = sbr.rel (0) target = $region41
    $region40: #{tpu_custom_call.1} parent=1 // pred_region
      _
    $region41: #{tpu_custom_call.1} parent=1 // pred_fallthru
      _
    // Predicated region
    $region42: #{tpu_custom_call.1} parent=1 // pred_check
      _
    $region43: #{tpu_custom_call.1} parent=1 // pred_check_branch
      %40 = sbr.rel (0) target = $region45
    $region44: #{tpu_custom_call.1} parent=1 // pred_region
      _
    $region45: #{tpu_custom_call.1} parent=1 // pred_fallthru
      _
    // Predicated region
    $region46: #{tpu_custom_call.1} parent=1 // pred_check
      _
    $region47: #{tpu_custom_call.1} parent=1 // pred_check_branch
      %42 = sbr.rel (0) target = $region49
    $region48: #{tpu_custom_call.1} parent=1 // pred_region
      _
    $region49: #{tpu_custom_call.1} parent=1 // pred_fallthru
      _
    // Predicated region
    $region50: #{tpu_custom_call.1} parent=1 // pred_check
      _
    $region51: #{tpu_custom_call.1} parent=1 // pred_check_branch
      %44 = sbr.rel (0) target = $region53
    $region52: #{tpu_custom_call.1} parent=1 // pred_region
      _
    $region53: #{tpu_custom_call.1} parent=1 // pred_fallthru
      _
    %v45 = vld [vmem:[%s0] sm:$0xff]
    %v46 = vld [vmem:[%s0 + $0x8] sm:$0xff]
    %v47 = vld [vmem:[%s1] sm:$0x1]
    %v48 = vld [vmem:[%s2] sm:$0x1]
    %vm49 = vcmask 261120
    %v50 = vsel %vm49, %v45, 0.0
    %51 = vadd.xlane.f32.xlu0 %v50
    %v52 = vpop.xlane.xlu0 %51
    %v53 = vsel %vm49, %v46, 0.0
    %54 = vadd.xlane.f32.xlu0 %v53
    %v55 = vpop.xlane.xlu0 %54
    %v56 = vrcp.pop 32.0
    %v57 = vmul.f32 %v52, %v56
    %v58 = vmul.f32 %v55, %v56
    %v59 = vsub.f32 %v45, %v57
    %v60 = vsub.f32 %v46, %v58
    %v61 = vmul.f32 %v59, %v59
    %v62 = vmul.f32 %v60, %v60
    %v63 = vsel %vm49, %v61, 0.0
    %64 = vadd.xlane.f32.xlu0 %v63
    %v65 = vpop.xlane.xlu0 %64
    %v66 = vsel %vm49, %v62, 0.0
    %67 = vadd.xlane.f32.xlu0 %v66
    %v68 = vpop.xlane.xlu0 %67
    %v69 = vmul.f32 %v65, %v56
    %v70 = vmul.f32 %v68, %v56
    %v71 = vadd.f32 %v69, 1e-05
    %v72 = vadd.f32 %v70, 1e-05
    %v73 = vrsqrt.pop %v71
    %v74 = vrsqrt.pop %v72
    %v75 = vmul.f32 %v59, %v73
    %v76 = vmul.f32 %v60, %v74
    %v78 = vlaneseq
    %v79 = vshrl.u32 %v78, 7
    %v80 = vsub.s32 0, %v79
    %v81 = vrot.slane %v47, %v80
    %v83 = vmul.f32 %v75, %v81
    %v84 = vmul.f32 %v76, %v81
    %v86 = vlaneseq
    %v87 = vshrl.u32 %v86, 7
    %v88 = vsub.s32 0, %v87
    %v89 = vrot.slane %v48, %v88
    %v91 = vadd.f32 %v83, %v89
    %v92 = vadd.f32 %v84, %v89
    %v93 = vld [vmem:[%s3] sm:$0xff]
    %v94 = vld [vmem:[%s3 + $0x8] sm:$0xff]
    %v95 = vld [vmem:[%s3 + $0x10] sm:$0xff]
    %v96 = vld [vmem:[%s3 + $0x18] sm:$0xff]
    %v97 = vld [vmem:[%s4] sm:$0x1]
    %v99 = vlaneseq
    %v100 = vshrl.u32 %v99, 7
    %v101 = vsub.s32 0, %v100
    %v102 = vrot.slane %v97, %v101
    %v105 = vsel %vm49, %v91, 0
    %v108 = vsel %vm49, %v92, 0
    %110 = vmatprep.subr.mxu0 0.0
    %111 = vmatpush1.msra.mxu0 %v93
    %112 = vmatprep.subr.mxu0 0.0
    %113 = vmatpush1.msra.mxu0 %v94
    %114 = vmatprep.subr.mxu0 0.0
    %115 = vmatpush1.msra.mxu0 %v95
    %116 = vmatprep.subr.mxu0 0.0
    %117 = vmatpush1.msra.mxu0 %v96
    %118 = vmatprep.subr.mxu0 0.0
    %119 = vmatpush1.msra.mxu0 0.0
    %120 = vmatprep.subr.mxu0 0.0
    %121 = vmatpush1.msra.mxu0 0.0
    %122 = vmatprep.subr.mxu0 0.0
    %123 = vmatpush1.msra.mxu0 0.0
    %124 = vmatprep.subr.mxu0 0.0
    %125 = vmatpush1.msra.mxu0 0.0
    %126 = vmatprep.subr.mxu0 0.0
    %127 = vmatpush1.msra.mxu0 0.0
    %128 = vmatprep.subr.mxu0 0.0
    %129 = vmatpush1.msra.mxu0 0.0
    %130 = vmatprep.subr.mxu0 0.0
    %131 = vmatpush1.msra.mxu0 0.0
    %132 = vmatprep.subr.mxu0 0.0
    %133 = vmatpush1.msra.mxu0 0.0
    %134 = vmatprep.subr.mxu0 0.0
    %135 = vmatpush1.msra.mxu0 0.0
    %136 = vmatprep.subr.mxu0 0.0
    %137 = vmatpush1.msra.mxu0 0.0
    %138 = vmatprep.subr.mxu0 0.0
    %139 = vmatpush1.msra.mxu0 0.0
    %140 = vmatprep.subr.mxu0 0.0
    %141 = vmatpush1.msra.mxu0 0.0
    %142 = vmatprep.subr.mxu0 0.0
    %143 = vmatpush1.msra.mxu0 0.0
    %144 = vmatprep.subr.mxu0 0.0
    %145 = vmatpush1.msra.mxu0 0.0
    %146 = vmatprep.subr.mxu0 0.0
    %147 = vmatpush1.msra.mxu0 0.0
    %148 = vmatprep.subr.mxu0 0.0
    %149 = vmatpush1.msra.mxu0 0.0
    %150 = vmatprep.subr.mxu0 0.0
    %151 = vmatpush1.msra.mxu0 0.0
    %152 = vmatprep.subr.mxu0 0.0
    %153 = vmatpush1.msra.mxu0 0.0
    %154 = vmatprep.subr.mxu0 0.0
    %155 = vmatpush1.msra.mxu0 0.0
    %156 = vmatprep.subr.mxu0 0.0
    %157 = vmatpush1.msra.mxu0 0.0
    %158 = vmatprep.subr.mxu0 0.0
    %159 = vmatpush1.msra.mxu0 0.0
    %160 = vmatprep.subr.mxu0 0.0
    %161 = vmatpush1.msra.mxu0 0.0
    %162 = vmatprep.subr.mxu0 0.0
    %163 = vmatpush1.msra.mxu0 0.0
    %164 = vmatprep.subr.mxu0 0.0
    %165 = vmatpush1.msra.mxu0 0.0
    %166 = vmatprep.subr.mxu0 0.0
    %167 = vmatpush1.msra.mxu0 0.0
    %168 = vmatprep.subr.mxu0 0.0
    %169 = vmatpush1.msra.mxu0 0.0
    %170 = vmatprep.subr.mxu0 0.0
    %171 = vmatpush1.msra.mxu0 0.0
    %172 = vmatprep.subr.mxu0 0.0
    %173 = vmatpush1.msra.mxu0 0.0
    %174 = vmatprep.mubr.f32.mxu0 0.0
    %175 = vmatmul.mubr.f32.gmra.mrb[0].mxu0 %v105
    %v176 = vpop.f32.mrb[0].mxu0
    %v177 = vadd.f32 %v102, %v176
    %v178 = vpop.f32.mrb[0].mxu0
    %179 = vmatprep.mubr.f32.mxu0 0.0
    %180 = vmatmul.mubr.f32.gmra.mrb[0].mxu0 %v108
    %v181 = vpop.f32.mrb[0].mxu0
    %v182 = vadd.f32 %v102, %v181
    %v183 = vpop.f32.mrb[0].mxu0
    %184 = vdwg.mxu0
    %v185 = vlaneseq
    %v186 = vshrl.u32 %v185, 7
    %v187 = vlaneseq
    %v188 = vand.u32 %v187, 127
    %vm189 = vcmp.le.s32.totalorder %v188, %v186
    %191 = vrot.lane.b32.xlu0 %v177, 96
    %v192 = vpop.permute.xlu0 %191
    %vm193 = vcmask 64512
    %v194 = vsel %vm193, %v177, 0
    %v196 = vsel %vm193, %v192, 0
    %198 = vmatprep.subr.mxu0 0.0
    %199 = vmatpush1.xpose.msra.mxu0 %v196
    %200 = vmatprep.subr.mxu0 0.0
    %201 = vmatpush1.xpose.msra.mxu0 0.0
    %202 = vmatprep.subr.mxu0 0.0
    %203 = vmatpush1.xpose.msra.mxu0 0.0
    %204 = vmatprep.subr.mxu0 0.0
    %205 = vmatpush1.xpose.msra.mxu0 0.0
    %206 = vmatprep.subr.mxu0 0.0
    %207 = vmatpush1.xpose.msra.mxu0 0.0
    %208 = vmatprep.subr.mxu0 0.0
    %209 = vmatpush1.xpose.msra.mxu0 0.0
    %210 = vmatprep.subr.mxu0 0.0
    %211 = vmatpush1.xpose.msra.mxu0 0.0
    %212 = vmatprep.subr.mxu0 0.0
    %213 = vmatpush1.xpose.msra.mxu0 0.0
    %214 = vmatprep.subr.mxu0 0.0
    %215 = vmatpush1.xpose.msra.mxu0 0.0
    %216 = vmatprep.subr.mxu0 0.0
    %217 = vmatpush1.xpose.msra.mxu0 0.0
    %218 = vmatprep.subr.mxu0 0.0
    %219 = vmatpush1.xpose.msra.mxu0 0.0
    %220 = vmatprep.subr.mxu0 0.0
    %221 = vmatpush1.xpose.msra.mxu0 0.0
    %222 = vmatprep.subr.mxu0 0.0
    %223 = vmatpush1.xpose.msra.mxu0 0.0
    %224 = vmatprep.subr.mxu0 0.0
    %225 = vmatpush1.xpose.msra.mxu0 0.0
    %226 = vmatprep.subr.mxu0 0.0
    %227 = vmatpush1.xpose.msra.mxu0 0.0
    %228 = vmatprep.subr.mxu0 0.0
    %229 = vmatpush1.xpose.msra.mxu0 0.0
    %230 = vmatprep.subr.mxu0 0.0
    %231 = vmatpush1.xpose.msra.mxu0 0.0
    %232 = vmatprep.subr.mxu0 0.0
    %233 = vmatpush1.xpose.msra.mxu0 0.0
    %234 = vmatprep.subr.mxu0 0.0
    %235 = vmatpush1.xpose.msra.mxu0 0.0
    %236 = vmatprep.subr.mxu0 0.0
    %237 = vmatpush1.xpose.msra.mxu0 0.0
    %238 = vmatprep.subr.mxu0 0.0
    %239 = vmatpush1.xpose.msra.mxu0 0.0
    %240 = vmatprep.subr.mxu0 0.0
    %241 = vmatpush1.xpose.msra.mxu0 0.0
    %242 = vmatprep.subr.mxu0 0.0
    %243 = vmatpush1.xpose.msra.mxu0 0.0
    %244 = vmatprep.subr.mxu0 0.0
    %245 = vmatpush1.xpose.msra.mxu0 0.0
    %246 = vmatprep.subr.mxu0 0.0
    %247 = vmatpush1.xpose.msra.mxu0 0.0
    %248 = vmatprep.subr.mxu0 0.0
    %249 = vmatpush1.xpose.msra.mxu0 0.0
    %250 = vmatprep.subr.mxu0 0.0
    %251 = vmatpush1.xpose.msra.mxu0 0.0
    %252 = vmatprep.subr.mxu0 0.0
    %253 = vmatpush1.xpose.msra.mxu0 0.0
    %254 = vmatprep.subr.mxu0 0.0
    %255 = vmatpush1.xpose.msra.mxu0 0.0
    %256 = vmatprep.subr.mxu0 0.0
    %257 = vmatpush1.xpose.msra.mxu0 0.0
    %258 = vmatprep.subr.mxu0 0.0
    %259 = vmatpush1.xpose.msra.mxu0 0.0
    %260 = vmatprep.subr.mxu0 0.0
    %261 = vmatpush1.xpose.msra.mxu0 0.0
    %262 = vmatprep.mubr.f32.mxu0 0.0
    %263 = vmatmul.mubr.f32.gmra.mrb[0].mxu0 %v194
    %v264 = vpop.f32.mrb[0].mxu0
    %v265 = vadd.f32 0.0, %v264
    %v266 = vpop.f32.mrb[0].mxu0
    %267 = vdwg.mxu0
    %v268 = vmul.f32 %v265, 0.35355338
    %v269 = vsel %vm189, %v268, -1e+30
    %v270 = vsel %vm193, %v269, -inf
    %271 = vmax.xlane.f32.xlu0 %v270
    %v272 = vpop.xlane.xlu0 %271
    %v273 = vsub.f32 %v269, %v272
    %v274 = vmul.f32 %v273, 1.442695
    %v275 = vpow.pop %v274
    %v276 = vsel %vm193, %v275, 0.0
    %277 = vadd.xlane.f32.xlu0 %v276
    %v278 = vpop.xlane.xlu0 %277
    %v279 = vrcp.pop %v278
    %v280 = vmul.f32 %v275, %v279
    %281 = vrot.lane.b32.xlu0 %v177, 64
    %v282 = vpop.permute.xlu0 %281
    %v285 = vsel %vm193, %v280, 0
    %287 = vmatprep.subr.mxu0 0.0
    %288 = vmatpush1.msra.mxu0 %v282
    %289 = vmatprep.subr.mxu0 0.0
    %290 = vmatpush1.msra.mxu0 0.0
    %291 = vmatprep.subr.mxu0 0.0
    %292 = vmatpush1.msra.mxu0 0.0
    %293 = vmatprep.subr.mxu0 0.0
    %294 = vmatpush1.msra.mxu0 0.0
    %295 = vmatprep.subr.mxu0 0.0
    %296 = vmatpush1.msra.mxu0 0.0
    %297 = vmatprep.subr.mxu0 0.0
    %298 = vmatpush1.msra.mxu0 0.0
    %299 = vmatprep.subr.mxu0 0.0
    %300 = vmatpush1.msra.mxu0 0.0
    %301 = vmatprep.subr.mxu0 0.0
    %302 = vmatpush1.msra.mxu0 0.0
    %303 = vmatprep.subr.mxu0 0.0
    %304 = vmatpush1.msra.mxu0 0.0
    %305 = vmatprep.subr.mxu0 0.0
    %306 = vmatpush1.msra.mxu0 0.0
    %307 = vmatprep.subr.mxu0 0.0
    %308 = vmatpush1.msra.mxu0 0.0
    %309 = vmatprep.subr.mxu0 0.0
    %310 = vmatpush1.msra.mxu0 0.0
    %311 = vmatprep.subr.mxu0 0.0
    %312 = vmatpush1.msra.mxu0 0.0
    %313 = vmatprep.subr.mxu0 0.0
    %314 = vmatpush1.msra.mxu0 0.0
    %315 = vmatprep.subr.mxu0 0.0
    %316 = vmatpush1.msra.mxu0 0.0
    %317 = vmatprep.subr.mxu0 0.0
    %318 = vmatpush1.msra.mxu0 0.0
    %319 = vmatprep.subr.mxu0 0.0
    %320 = vmatpush1.msra.mxu0 0.0
    %321 = vmatprep.subr.mxu0 0.0
    %322 = vmatpush1.msra.mxu0 0.0
    %323 = vmatprep.subr.mxu0 0.0
    %324 = vmatpush1.msra.mxu0 0.0
    %325 = vmatprep.subr.mxu0 0.0
    %326 = vmatpush1.msra.mxu0 0.0
    %327 = vmatprep.subr.mxu0 0.0
    %328 = vmatpush1.msra.mxu0 0.0
    %329 = vmatprep.subr.mxu0 0.0
    %330 = vmatpush1.msra.mxu0 0.0
    %331 = vmatprep.subr.mxu0 0.0
    %332 = vmatpush1.msra.mxu0 0.0
    %333 = vmatprep.subr.mxu0 0.0
    %334 = vmatpush1.msra.mxu0 0.0
    %335 = vmatprep.subr.mxu0 0.0
    %336 = vmatpush1.msra.mxu0 0.0
    %337 = vmatprep.subr.mxu0 0.0
    %338 = vmatpush1.msra.mxu0 0.0
    %339 = vmatprep.subr.mxu0 0.0
    %340 = vmatpush1.msra.mxu0 0.0
    %341 = vmatprep.subr.mxu0 0.0
    %342 = vmatpush1.msra.mxu0 0.0
    %343 = vmatprep.subr.mxu0 0.0
    %344 = vmatpush1.msra.mxu0 0.0
    %345 = vmatprep.subr.mxu0 0.0
    %346 = vmatpush1.msra.mxu0 0.0
    %347 = vmatprep.subr.mxu0 0.0
    %348 = vmatpush1.msra.mxu0 0.0
    %349 = vmatprep.subr.mxu0 0.0
    %350 = vmatpush1.msra.mxu0 0.0
    %351 = vmatprep.mubr.f32.mxu0 0.0
    %352 = vmatmul.mubr.f32.gmra.mrb[0].mxu0 %v285
    %v353 = vpop.f32.mrb[0].mxu0
    %v354 = vadd.f32 0.0, %v353
    %v355 = vpop.f32.mrb[0].mxu0
    %356 = vdwg.mxu0
    %357 = vst.msk [vmem:[#allocation2] sm:$0xff] %vm193, %v354
    %358 = vrot.lane.b32.xlu0 %v177, 120
    %v359 = vpop.permute.xlu0 %358
    %360 = vrot.lane.b32.xlu0 %v177, 88
    %v361 = vpop.permute.xlu0 %360
    %v362 = vsel %vm193, %v359, 0
    %v364 = vsel %vm193, %v361, 0
    %366 = vmatprep.subr.mxu0 0.0
    %367 = vmatpush1.xpose.msra.mxu0 %v364
    %368 = vmatprep.subr.mxu0 0.0
    %369 = vmatpush1.xpose.msra.mxu0 0.0
    %370 = vmatprep.subr.mxu0 0.0
    %371 = vmatpush1.xpose.msra.mxu0 0.0
    %372 = vmatprep.subr.mxu0 0.0
    %373 = vmatpush1.xpose.msra.mxu0 0.0
    %374 = vmatprep.subr.mxu0 0.0
    %375 = vmatpush1.xpose.msra.mxu0 0.0
    %376 = vmatprep.subr.mxu0 0.0
    %377 = vmatpush1.xpose.msra.mxu0 0.0
    %378 = vmatprep.subr.mxu0 0.0
    %379 = vmatpush1.xpose.msra.mxu0 0.0
    %380 = vmatprep.subr.mxu0 0.0
    %381 = vmatpush1.xpose.msra.mxu0 0.0
    %382 = vmatprep.subr.mxu0 0.0
    %383 = vmatpush1.xpose.msra.mxu0 0.0
    %384 = vmatprep.subr.mxu0 0.0
    %385 = vmatpush1.xpose.msra.mxu0 0.0
    %386 = vmatprep.subr.mxu0 0.0
    %387 = vmatpush1.xpose.msra.mxu0 0.0
    %388 = vmatprep.subr.mxu0 0.0
    %389 = vmatpush1.xpose.msra.mxu0 0.0
    %390 = vmatprep.subr.mxu0 0.0
    %391 = vmatpush1.xpose.msra.mxu0 0.0
    %392 = vmatprep.subr.mxu0 0.0
    %393 = vmatpush1.xpose.msra.mxu0 0.0
    %394 = vmatprep.subr.mxu0 0.0
    %395 = vmatpush1.xpose.msra.mxu0 0.0
    %396 = vmatprep.subr.mxu0 0.0
    %397 = vmatpush1.xpose.msra.mxu0 0.0
    %398 = vmatprep.subr.mxu0 0.0
    %399 = vmatpush1.xpose.msra.mxu0 0.0
    %400 = vmatprep.subr.mxu0 0.0
    %401 = vmatpush1.xpose.msra.mxu0 0.0
    %402 = vmatprep.subr.mxu0 0.0
    %403 = vmatpush1.xpose.msra.mxu0 0.0
    %404 = vmatprep.subr.mxu0 0.0
    %405 = vmatpush1.xpose.msra.mxu0 0.0
    %406 = vmatprep.subr.mxu0 0.0
    %407 = vmatpush1.xpose.msra.mxu0 0.0
    %408 = vmatprep.subr.mxu0 0.0
    %409 = vmatpush1.xpose.msra.mxu0 0.0
    %410 = vmatprep.subr.mxu0 0.0
    %411 = vmatpush1.xpose.msra.mxu0 0.0
    %412 = vmatprep.subr.mxu0 0.0
    %413 = vmatpush1.xpose.msra.mxu0 0.0
    %414 = vmatprep.subr.mxu0 0.0
    %415 = vmatpush1.xpose.msra.mxu0 0.0
    %416 = vmatprep.subr.mxu0 0.0
    %417 = vmatpush1.xpose.msra.mxu0 0.0
    %418 = vmatprep.subr.mxu0 0.0
    %419 = vmatpush1.xpose.msra.mxu0 0.0
    %420 = vmatprep.subr.mxu0 0.0
    %421 = vmatpush1.xpose.msra.mxu0 0.0
    %422 = vmatprep.subr.mxu0 0.0
    %423 = vmatpush1.xpose.msra.mxu0 0.0
    %424 = vmatprep.subr.mxu0 0.0
    %425 = vmatpush1.xpose.msra.mxu0 0.0
    %426 = vmatprep.subr.mxu0 0.0
    %427 = vmatpush1.xpose.msra.mxu0 0.0
    %428 = vmatprep.subr.mxu0 0.0
    %429 = vmatpush1.xpose.msra.mxu0 0.0
    %430 = vmatprep.mubr.f32.mxu0 0.0
    %431 = vmatmul.mubr.f32.gmra.mrb[0].mxu0 %v362
    %v432 = vpop.f32.mrb[0].mxu0
    %v433 = vadd.f32 0.0, %v432
    %v434 = vpop.f32.mrb[0].mxu0
    %435 = vdwg.mxu0
    %v436 = vmul.f32 %v433, 0.35355338
    %v437 = vsel %vm189, %v436, -1e+30
    %v438 = vsel %vm193, %v437, -inf
    %439 = vmax.xlane.f32.xlu0 %v438
    %v440 = vpop.xlane.xlu0 %439
    %v441 = vsub.f32 %v437, %v440
    %v442 = vmul.f32 %v441, 1.442695
    %v443 = vpow.pop %v442
    %v444 = vsel %vm193, %v443, 0.0
    %445 = vadd.xlane.f32.xlu0 %v444
    %v446 = vpop.xlane.xlu0 %445
    %v447 = vrcp.pop %v446
    %v448 = vmul.f32 %v443, %v447
    %449 = vrot.lane.b32.xlu0 %v177, 56
    %v450 = vpop.permute.xlu0 %449
    %v453 = vsel %vm193, %v448, 0
    %455 = vmatprep.subr.mxu0 0.0
    %456 = vmatpush1.msra.mxu0 %v450
    %457 = vmatprep.subr.mxu0 0.0
    %458 = vmatpush1.msra.mxu0 0.0
    %459 = vmatprep.subr.mxu0 0.0
    %460 = vmatpush1.msra.mxu0 0.0
    %461 = vmatprep.subr.mxu0 0.0
    %462 = vmatpush1.msra.mxu0 0.0
    %463 = vmatprep.subr.mxu0 0.0
    %464 = vmatpush1.msra.mxu0 0.0
    %465 = vmatprep.subr.mxu0 0.0
    %466 = vmatpush1.msra.mxu0 0.0
    %467 = vmatprep.subr.mxu0 0.0
    %468 = vmatpush1.msra.mxu0 0.0
    %469 = vmatprep.subr.mxu0 0.0
    %470 = vmatpush1.msra.mxu0 0.0
    %471 = vmatprep.subr.mxu0 0.0
    %472 = vmatpush1.msra.mxu0 0.0
    %473 = vmatprep.subr.mxu0 0.0
    %474 = vmatpush1.msra.mxu0 0.0
    %475 = vmatprep.subr.mxu0 0.0
    %476 = vmatpush1.msra.mxu0 0.0
    %477 = vmatprep.subr.mxu0 0.0
    %478 = vmatpush1.msra.mxu0 0.0
    %479 = vmatprep.subr.mxu0 0.0
    %480 = vmatpush1.msra.mxu0 0.0
    %481 = vmatprep.subr.mxu0 0.0
    %482 = vmatpush1.msra.mxu0 0.0
    %483 = vmatprep.subr.mxu0 0.0
    %484 = vmatpush1.msra.mxu0 0.0
    %485 = vmatprep.subr.mxu0 0.0
    %486 = vmatpush1.msra.mxu0 0.0
    %487 = vmatprep.subr.mxu0 0.0
    %488 = vmatpush1.msra.mxu0 0.0
    %489 = vmatprep.subr.mxu0 0.0
    %490 = vmatpush1.msra.mxu0 0.0
    %491 = vmatprep.subr.mxu0 0.0
    %492 = vmatpush1.msra.mxu0 0.0
    %493 = vmatprep.subr.mxu0 0.0
    %494 = vmatpush1.msra.mxu0 0.0
    %495 = vmatprep.subr.mxu0 0.0
    %496 = vmatpush1.msra.mxu0 0.0
    %497 = vmatprep.subr.mxu0 0.0
    %498 = vmatpush1.msra.mxu0 0.0
    %499 = vmatprep.subr.mxu0 0.0
    %500 = vmatpush1.msra.mxu0 0.0
    %501 = vmatprep.subr.mxu0 0.0
    %502 = vmatpush1.msra.mxu0 0.0
    %503 = vmatprep.subr.mxu0 0.0
    %504 = vmatpush1.msra.mxu0 0.0
    %505 = vmatprep.subr.mxu0 0.0
    %506 = vmatpush1.msra.mxu0 0.0
    %507 = vmatprep.subr.mxu0 0.0
    %508 = vmatpush1.msra.mxu0 0.0
    %509 = vmatprep.subr.mxu0 0.0
    %510 = vmatpush1.msra.mxu0 0.0
    %511 = vmatprep.subr.mxu0 0.0
    %512 = vmatpush1.msra.mxu0 0.0
    %513 = vmatprep.subr.mxu0 0.0
    %514 = vmatpush1.msra.mxu0 0.0
    %515 = vmatprep.subr.mxu0 0.0
    %516 = vmatpush1.msra.mxu0 0.0
    %517 = vmatprep.subr.mxu0 0.0
    %518 = vmatpush1.msra.mxu0 0.0
    %519 = vmatprep.mubr.f32.mxu0 0.0
    %520 = vmatmul.mubr.f32.gmra.mrb[0].mxu0 %v453
    %v521 = vpop.f32.mrb[0].mxu0
    %v522 = vadd.f32 0.0, %v521
    %v523 = vpop.f32.mrb[0].mxu0
    %524 = vdwg.mxu0
    %526 = vrot.lane.b32.xlu0 %v522, 8
    %v527 = vpop.permute.xlu0 %526
    %vm529 = vcmask 130112
    %530 = vst.msk [vmem:[#allocation2] sm:$0xff] %vm529, %v527
    %531 = vrot.lane.b32.xlu0 %v177, 112
    %v532 = vpop.permute.xlu0 %531
    %533 = vrot.lane.b32.xlu0 %v177, 80
    %v534 = vpop.permute.xlu0 %533
    %v535 = vsel %vm193, %v532, 0
    %v537 = vsel %vm193, %v534, 0
    %539 = vmatprep.subr.mxu0 0.0
    %540 = vmatpush1.xpose.msra.mxu0 %v537
    %541 = vmatprep.subr.mxu0 0.0
    %542 = vmatpush1.xpose.msra.mxu0 0.0
    %543 = vmatprep.subr.mxu0 0.0
    %544 = vmatpush1.xpose.msra.mxu0 0.0
    %545 = vmatprep.subr.mxu0 0.0
    %546 = vmatpush1.xpose.msra.mxu0 0.0
    %547 = vmatprep.subr.mxu0 0.0
    %548 = vmatpush1.xpose.msra.mxu0 0.0
    %549 = vmatprep.subr.mxu0 0.0
    %550 = vmatpush1.xpose.msra.mxu0 0.0
    %551 = vmatprep.subr.mxu0 0.0
    %552 = vmatpush1.xpose.msra.mxu0 0.0
    %553 = vmatprep.subr.mxu0 0.0
    %554 = vmatpush1.xpose.msra.mxu0 0.0
    %555 = vmatprep.subr.mxu0 0.0
    %556 = vmatpush1.xpose.msra.mxu0 0.0
    %557 = vmatprep.subr.mxu0 0.0
    %558 = vmatpush1.xpose.msra.mxu0 0.0
    %559 = vmatprep.subr.mxu0 0.0
    %560 = vmatpush1.xpose.msra.mxu0 0.0
    %561 = vmatprep.subr.mxu0 0.0
    %562 = vmatpush1.xpose.msra.mxu0 0.0
    %563 = vmatprep.subr.mxu0 0.0
    %564 = vmatpush1.xpose.msra.mxu0 0.0
    %565 = vmatprep.subr.mxu0 0.0
    %566 = vmatpush1.xpose.msra.mxu0 0.0
    %567 = vmatprep.subr.mxu0 0.0
    %568 = vmatpush1.xpose.msra.mxu0 0.0
    %569 = vmatprep.subr.mxu0 0.0
    %570 = vmatpush1.xpose.msra.mxu0 0.0
    %571 = vmatprep.subr.mxu0 0.0
    %572 = vmatpush1.xpose.msra.mxu0 0.0
    %573 = vmatprep.subr.mxu0 0.0
    %574 = vmatpush1.xpose.msra.mxu0 0.0
    %575 = vmatprep.subr.mxu0 0.0
    %576 = vmatpush1.xpose.msra.mxu0 0.0
    %577 = vmatprep.subr.mxu0 0.0
    %578 = vmatpush1.xpose.msra.mxu0 0.0
    %579 = vmatprep.subr.mxu0 0.0
    %580 = vmatpush1.xpose.msra.mxu0 0.0
    %581 = vmatprep.subr.mxu0 0.0
    %582 = vmatpush1.xpose.msra.mxu0 0.0
    %583 = vmatprep.subr.mxu0 0.0
    %584 = vmatpush1.xpose.msra.mxu0 0.0
    %585 = vmatprep.subr.mxu0 0.0
    %586 = vmatpush1.xpose.msra.mxu0 0.0
    %587 = vmatprep.subr.mxu0 0.0
    %588 = vmatpush1.xpose.msra.mxu0 0.0
    %589 = vmatprep.subr.mxu0 0.0
    %590 = vmatpush1.xpose.msra.mxu0 0.0
    %591 = vmatprep.subr.mxu0 0.0
    %592 = vmatpush1.xpose.msra.mxu0 0.0
    %593 = vmatprep.subr.mxu0 0.0
    %594 = vmatpush1.xpose.msra.mxu0 0.0
    %595 = vmatprep.subr.mxu0 0.0
    %596 = vmatpush1.xpose.msra.mxu0 0.0
    %597 = vmatprep.subr.mxu0 0.0
    %598 = vmatpush1.xpose.msra.mxu0 0.0
    %599 = vmatprep.subr.mxu0 0.0
    %600 = vmatpush1.xpose.msra.mxu0 0.0
    %601 = vmatprep.subr.mxu0 0.0
    %602 = vmatpush1.xpose.msra.mxu0 0.0
    %603 = vmatprep.mubr.f32.mxu0 0.0
    %604 = vmatmul.mubr.f32.gmra.mrb[0].mxu0 %v535
    %v605 = vpop.f32.mrb[0].mxu0
    %v606 = vadd.f32 0.0, %v605
    %v607 = vpop.f32.mrb[0].mxu0
    %608 = vdwg.mxu0
    %v609 = vmul.f32 %v606, 0.35355338
    %v610 = vsel %vm189, %v609, -1e+30
    %v611 = vsel %vm193, %v610, -inf
    %612 = vmax.xlane.f32.xlu0 %v611
    %v613 = vpop.xlane.xlu0 %612
    %v614 = vsub.f32 %v610, %v613
    %v615 = vmul.f32 %v614, 1.442695
    %v616 = vpow.pop %v615
    %v617 = vsel %vm193, %v616, 0.0
    %618 = vadd.xlane.f32.xlu0 %v617
    %v619 = vpop.xlane.xlu0 %618
    %v620 = vrcp.pop %v619
    %v621 = vmul.f32 %v616, %v620
    %622 = vrot.lane.b32.xlu0 %v177, 48
    %v623 = vpop.permute.xlu0 %622
    %v626 = vsel %vm193, %v621, 0
    %628 = vmatprep.subr.mxu0 0.0
    %629 = vmatpush1.msra.mxu0 %v623
    %630 = vmatprep.subr.mxu0 0.0
    %631 = vmatpush1.msra.mxu0 0.0
    %632 = vmatprep.subr.mxu0 0.0
    %633 = vmatpush1.msra.mxu0 0.0
    %634 = vmatprep.subr.mxu0 0.0
    %635 = vmatpush1.msra.mxu0 0.0
    %636 = vmatprep.subr.mxu0 0.0
    %637 = vmatpush1.msra.mxu0 0.0
    %638 = vmatprep.subr.mxu0 0.0
    %639 = vmatpush1.msra.mxu0 0.0
    %640 = vmatprep.subr.mxu0 0.0
    %641 = vmatpush1.msra.mxu0 0.0
    %642 = vmatprep.subr.mxu0 0.0
    %643 = vmatpush1.msra.mxu0 0.0
    %644 = vmatprep.subr.mxu0 0.0
    %645 = vmatpush1.msra.mxu0 0.0
    %646 = vmatprep.subr.mxu0 0.0
    %647 = vmatpush1.msra.mxu0 0.0
    %648 = vmatprep.subr.mxu0 0.0
    %649 = vmatpush1.msra.mxu0 0.0
    %650 = vmatprep.subr.mxu0 0.0
    %651 = vmatpush1.msra.mxu0 0.0
    %652 = vmatprep.subr.mxu0 0.0
    %653 = vmatpush1.msra.mxu0 0.0
    %654 = vmatprep.subr.mxu0 0.0
    %655 = vmatpush1.msra.mxu0 0.0
    %656 = vmatprep.subr.mxu0 0.0
    %657 = vmatpush1.msra.mxu0 0.0
    %658 = vmatprep.subr.mxu0 0.0
    %659 = vmatpush1.msra.mxu0 0.0
    %660 = vmatprep.subr.mxu0 0.0
    %661 = vmatpush1.msra.mxu0 0.0
    %662 = vmatprep.subr.mxu0 0.0
    %663 = vmatpush1.msra.mxu0 0.0
    %664 = vmatprep.subr.mxu0 0.0
    %665 = vmatpush1.msra.mxu0 0.0
    %666 = vmatprep.subr.mxu0 0.0
    %667 = vmatpush1.msra.mxu0 0.0
    %668 = vmatprep.subr.mxu0 0.0
    %669 = vmatpush1.msra.mxu0 0.0
    %670 = vmatprep.subr.mxu0 0.0
    %671 = vmatpush1.msra.mxu0 0.0
    %672 = vmatprep.subr.mxu0 0.0
    %673 = vmatpush1.msra.mxu0 0.0
    %674 = vmatprep.subr.mxu0 0.0
    %675 = vmatpush1.msra.mxu0 0.0
    %676 = vmatprep.subr.mxu0 0.0
    %677 = vmatpush1.msra.mxu0 0.0
    %678 = vmatprep.subr.mxu0 0.0
    %679 = vmatpush1.msra.mxu0 0.0
    %680 = vmatprep.subr.mxu0 0.0
    %681 = vmatpush1.msra.mxu0 0.0
    %682 = vmatprep.subr.mxu0 0.0
    %683 = vmatpush1.msra.mxu0 0.0
    %684 = vmatprep.subr.mxu0 0.0
    %685 = vmatpush1.msra.mxu0 0.0
    %686 = vmatprep.subr.mxu0 0.0
    %687 = vmatpush1.msra.mxu0 0.0
    %688 = vmatprep.subr.mxu0 0.0
    %689 = vmatpush1.msra.mxu0 0.0
    %690 = vmatprep.subr.mxu0 0.0
    %691 = vmatpush1.msra.mxu0 0.0
    %692 = vmatprep.mubr.f32.mxu0 0.0
    %693 = vmatmul.mubr.f32.gmra.mrb[0].mxu0 %v626
    %v694 = vpop.f32.mrb[0].mxu0
    %v695 = vadd.f32 0.0, %v694
    %v696 = vpop.f32.mrb[0].mxu0
    %697 = vdwg.mxu0
    %699 = vrot.lane.b32.xlu0 %v695, 16
    %v700 = vpop.permute.xlu0 %699
    %vm702 = vcmask 195712
    %703 = vst.msk [vmem:[#allocation2] sm:$0xff] %vm702, %v700
    %704 = vrot.lane.b32.xlu0 %v177, 104
    %v705 = vpop.permute.xlu0 %704
    %706 = vrot.lane.b32.xlu0 %v177, 72
    %v707 = vpop.permute.xlu0 %706
    %v708 = vsel %vm193, %v705, 0
    %v710 = vsel %vm193, %v707, 0
    %712 = vmatprep.subr.mxu0 0.0
    %713 = vmatpush1.xpose.msra.mxu0 %v710
    %714 = vmatprep.subr.mxu0 0.0
    %715 = vmatpush1.xpose.msra.mxu0 0.0
    %716 = vmatprep.subr.mxu0 0.0
    %717 = vmatpush1.xpose.msra.mxu0 0.0
    %718 = vmatprep.subr.mxu0 0.0
    %719 = vmatpush1.xpose.msra.mxu0 0.0
    %720 = vmatprep.subr.mxu0 0.0
    %721 = vmatpush1.xpose.msra.mxu0 0.0
    %722 = vmatprep.subr.mxu0 0.0
    %723 = vmatpush1.xpose.msra.mxu0 0.0
    %724 = vmatprep.subr.mxu0 0.0
    %725 = vmatpush1.xpose.msra.mxu0 0.0
    %726 = vmatprep.subr.mxu0 0.0
    %727 = vmatpush1.xpose.msra.mxu0 0.0
    %728 = vmatprep.subr.mxu0 0.0
    %729 = vmatpush1.xpose.msra.mxu0 0.0
    %730 = vmatprep.subr.mxu0 0.0
    %731 = vmatpush1.xpose.msra.mxu0 0.0
    %732 = vmatprep.subr.mxu0 0.0
    %733 = vmatpush1.xpose.msra.mxu0 0.0
    %734 = vmatprep.subr.mxu0 0.0
    %735 = vmatpush1.xpose.msra.mxu0 0.0
    %736 = vmatprep.subr.mxu0 0.0
    %737 = vmatpush1.xpose.msra.mxu0 0.0
    %738 = vmatprep.subr.mxu0 0.0
    %739 = vmatpush1.xpose.msra.mxu0 0.0
    %740 = vmatprep.subr.mxu0 0.0
    %741 = vmatpush1.xpose.msra.mxu0 0.0
    %742 = vmatprep.subr.mxu0 0.0
    %743 = vmatpush1.xpose.msra.mxu0 0.0
    %744 = vmatprep.subr.mxu0 0.0
    %745 = vmatpush1.xpose.msra.mxu0 0.0
    %746 = vmatprep.subr.mxu0 0.0
    %747 = vmatpush1.xpose.msra.mxu0 0.0
    %748 = vmatprep.subr.mxu0 0.0
    %749 = vmatpush1.xpose.msra.mxu0 0.0
    %750 = vmatprep.subr.mxu0 0.0
    %751 = vmatpush1.xpose.msra.mxu0 0.0
    %752 = vmatprep.subr.mxu0 0.0
    %753 = vmatpush1.xpose.msra.mxu0 0.0
    %754 = vmatprep.subr.mxu0 0.0
    %755 = vmatpush1.xpose.msra.mxu0 0.0
    %756 = vmatprep.subr.mxu0 0.0
    %757 = vmatpush1.xpose.msra.mxu0 0.0
    %758 = vmatprep.subr.mxu0 0.0
    %759 = vmatpush1.xpose.msra.mxu0 0.0
    %760 = vmatprep.subr.mxu0 0.0
    %761 = vmatpush1.xpose.msra.mxu0 0.0
    %762 = vmatprep.subr.mxu0 0.0
    %763 = vmatpush1.xpose.msra.mxu0 0.0
    %764 = vmatprep.subr.mxu0 0.0
    %765 = vmatpush1.xpose.msra.mxu0 0.0
    %766 = vmatprep.subr.mxu0 0.0
    %767 = vmatpush1.xpose.msra.mxu0 0.0
    %768 = vmatprep.subr.mxu0 0.0
    %769 = vmatpush1.xpose.msra.mxu0 0.0
    %770 = vmatprep.subr.mxu0 0.0
    %771 = vmatpush1.xpose.msra.mxu0 0.0
    %772 = vmatprep.subr.mxu0 0.0
    %773 = vmatpush1.xpose.msra.mxu0 0.0
    %774 = vmatprep.subr.mxu0 0.0
    %775 = vmatpush1.xpose.msra.mxu0 0.0
    %776 = vmatprep.mubr.f32.mxu0 0.0
    %777 = vmatmul.mubr.f32.gmra.mrb[0].mxu0 %v708
    %v778 = vpop.f32.mrb[0].mxu0
    %v779 = vadd.f32 0.0, %v778
    %v780 = vpop.f32.mrb[0].mxu0
    %781 = vdwg.mxu0
    %v782 = vmul.f32 %v779, 0.35355338
    %v783 = vsel %vm189, %v782, -1e+30
    %v784 = vsel %vm193, %v783, -inf
    %785 = vmax.xlane.f32.xlu0 %v784
    %v786 = vpop.xlane.xlu0 %785
    %v787 = vsub.f32 %v783, %v786
    %v788 = vmul.f32 %v787, 1.442695
    %v789 = vpow.pop %v788
    %v790 = vsel %vm193, %v789, 0.0
    %791 = vadd.xlane.f32.xlu0 %v790
    %v792 = vpop.xlane.xlu0 %791
    %v793 = vrcp.pop %v792
    %v794 = vmul.f32 %v789, %v793
    %795 = vrot.lane.b32.xlu0 %v177, 40
    %v796 = vpop.permute.xlu0 %795
    %v799 = vsel %vm193, %v794, 0
    %801 = vmatprep.subr.mxu0 0.0
    %802 = vmatpush1.msra.mxu0 %v796
    %803 = vmatprep.subr.mxu0 0.0
    %804 = vmatpush1.msra.mxu0 0.0
    %805 = vmatprep.subr.mxu0 0.0
    %806 = vmatpush1.msra.mxu0 0.0
    %807 = vmatprep.subr.mxu0 0.0
    %808 = vmatpush1.msra.mxu0 0.0
    %809 = vmatprep.subr.mxu0 0.0
    %810 = vmatpush1.msra.mxu0 0.0
    %811 = vmatprep.subr.mxu0 0.0
    %812 = vmatpush1.msra.mxu0 0.0
    %813 = vmatprep.subr.mxu0 0.0
    %814 = vmatpush1.msra.mxu0 0.0
    %815 = vmatprep.subr.mxu0 0.0
    %816 = vmatpush1.msra.mxu0 0.0
    %817 = vmatprep.subr.mxu0 0.0
    %818 = vmatpush1.msra.mxu0 0.0
    %819 = vmatprep.subr.mxu0 0.0
    %820 = vmatpush1.msra.mxu0 0.0
    %821 = vmatprep.subr.mxu0 0.0
    %822 = vmatpush1.msra.mxu0 0.0
    %823 = vmatprep.subr.mxu0 0.0
    %824 = vmatpush1.msra.mxu0 0.0
    %825 = vmatprep.subr.mxu0 0.0
    %826 = vmatpush1.msra.mxu0 0.0
    %827 = vmatprep.subr.mxu0 0.0
    %828 = vmatpush1.msra.mxu0 0.0
    %829 = vmatprep.subr.mxu0 0.0
    %830 = vmatpush1.msra.mxu0 0.0
    %831 = vmatprep.subr.mxu0 0.0
    %832 = vmatpush1.msra.mxu0 0.0
    %833 = vmatprep.subr.mxu0 0.0
    %834 = vmatpush1.msra.mxu0 0.0
    %835 = vmatprep.subr.mxu0 0.0
    %836 = vmatpush1.msra.mxu0 0.0
    %837 = vmatprep.subr.mxu0 0.0
    %838 = vmatpush1.msra.mxu0 0.0
    %839 = vmatprep.subr.mxu0 0.0
    %840 = vmatpush1.msra.mxu0 0.0
    %841 = vmatprep.subr.mxu0 0.0
    %842 = vmatpush1.msra.mxu0 0.0
    %843 = vmatprep.subr.mxu0 0.0
    %844 = vmatpush1.msra.mxu0 0.0
    %845 = vmatprep.subr.mxu0 0.0
    %846 = vmatpush1.msra.mxu0 0.0
    %847 = vmatprep.subr.mxu0 0.0
    %848 = vmatpush1.msra.mxu0 0.0
    %849 = vmatprep.subr.mxu0 0.0
    %850 = vmatpush1.msra.mxu0 0.0
    %851 = vmatprep.subr.mxu0 0.0
    %852 = vmatpush1.msra.mxu0 0.0
    %853 = vmatprep.subr.mxu0 0.0
    %854 = vmatpush1.msra.mxu0 0.0
    %855 = vmatprep.subr.mxu0 0.0
    %856 = vmatpush1.msra.mxu0 0.0
    %857 = vmatprep.subr.mxu0 0.0
    %858 = vmatpush1.msra.mxu0 0.0
    %859 = vmatprep.subr.mxu0 0.0
    %860 = vmatpush1.msra.mxu0 0.0
    %861 = vmatprep.subr.mxu0 0.0
    %862 = vmatpush1.msra.mxu0 0.0
    %863 = vmatprep.subr.mxu0 0.0
    %864 = vmatpush1.msra.mxu0 0.0
    %865 = vmatprep.mubr.f32.mxu0 0.0
    %866 = vmatmul.mubr.f32.gmra.mrb[0].mxu0 %v799
    %v867 = vpop.f32.mrb[0].mxu0
    %v868 = vadd.f32 0.0, %v867
    %v869 = vpop.f32.mrb[0].mxu0
    %870 = vdwg.mxu0
    %872 = vrot.lane.b32.xlu0 %v868, 24
    %v873 = vpop.permute.xlu0 %872
    %vm875 = vcmask 261312
    %876 = vst.msk [vmem:[#allocation2] sm:$0xff] %vm875, %v873
    %878 = vrot.lane.b32.xlu0 %v182, 96
    %v879 = vpop.permute.xlu0 %878
    %v880 = vsel %vm193, %v182, 0
    %v882 = vsel %vm193, %v879, 0
    %884 = vmatprep.subr.mxu0 0.0
    %885 = vmatpush1.xpose.msra.mxu0 %v882
    %886 = vmatprep.subr.mxu0 0.0
    %887 = vmatpush1.xpose.msra.mxu0 0.0
    %888 = vmatprep.subr.mxu0 0.0
    %889 = vmatpush1.xpose.msra.mxu0 0.0
    %890 = vmatprep.subr.mxu0 0.0
    %891 = vmatpush1.xpose.msra.mxu0 0.0
    %892 = vmatprep.subr.mxu0 0.0
    %893 = vmatpush1.xpose.msra.mxu0 0.0
    %894 = vmatprep.subr.mxu0 0.0
    %895 = vmatpush1.xpose.msra.mxu0 0.0
    %896 = vmatprep.subr.mxu0 0.0
    %897 = vmatpush1.xpose.msra.mxu0 0.0
    %898 = vmatprep.subr.mxu0 0.0
    %899 = vmatpush1.xpose.msra.mxu0 0.0
    %900 = vmatprep.subr.mxu0 0.0
    %901 = vmatpush1.xpose.msra.mxu0 0.0
    %902 = vmatprep.subr.mxu0 0.0
    %903 = vmatpush1.xpose.msra.mxu0 0.0
    %904 = vmatprep.subr.mxu0 0.0
    %905 = vmatpush1.xpose.msra.mxu0 0.0
    %906 = vmatprep.subr.mxu0 0.0
    %907 = vmatpush1.xpose.msra.mxu0 0.0
    %908 = vmatprep.subr.mxu0 0.0
    %909 = vmatpush1.xpose.msra.mxu0 0.0
    %910 = vmatprep.subr.mxu0 0.0
    %911 = vmatpush1.xpose.msra.mxu0 0.0
    %912 = vmatprep.subr.mxu0 0.0
    %913 = vmatpush1.xpose.msra.mxu0 0.0
    %914 = vmatprep.subr.mxu0 0.0
    %915 = vmatpush1.xpose.msra.mxu0 0.0
    %916 = vmatprep.subr.mxu0 0.0
    %917 = vmatpush1.xpose.msra.mxu0 0.0
    %918 = vmatprep.subr.mxu0 0.0
    %919 = vmatpush1.xpose.msra.mxu0 0.0
    %920 = vmatprep.subr.mxu0 0.0
    %921 = vmatpush1.xpose.msra.mxu0 0.0
    %922 = vmatprep.subr.mxu0 0.0
    %923 = vmatpush1.xpose.msra.mxu0 0.0
    %924 = vmatprep.subr.mxu0 0.0
    %925 = vmatpush1.xpose.msra.mxu0 0.0
    %926 = vmatprep.subr.mxu0 0.0
    %927 = vmatpush1.xpose.msra.mxu0 0.0
    %928 = vmatprep.subr.mxu0 0.0
    %929 = vmatpush1.xpose.msra.mxu0 0.0
    %930 = vmatprep.subr.mxu0 0.0
    %931 = vmatpush1.xpose.msra.mxu0 0.0
    %932 = vmatprep.subr.mxu0 0.0
    %933 = vmatpush1.xpose.msra.mxu0 0.0
    %934 = vmatprep.subr.mxu0 0.0
    %935 = vmatpush1.xpose.msra.mxu0 0.0
    %936 = vmatprep.subr.mxu0 0.0
    %937 = vmatpush1.xpose.msra.mxu0 0.0
    %938 = vmatprep.subr.mxu0 0.0
    %939 = vmatpush1.xpose.msra.mxu0 0.0
    %940 = vmatprep.subr.mxu0 0.0
    %941 = vmatpush1.xpose.msra.mxu0 0.0
    %942 = vmatprep.subr.mxu0 0.0
    %943 = vmatpush1.xpose.msra.mxu0 0.0
    %944 = vmatprep.subr.mxu0 0.0
    %945 = vmatpush1.xpose.msra.mxu0 0.0
    %946 = vmatprep.subr.mxu0 0.0
    %947 = vmatpush1.xpose.msra.mxu0 0.0
    %948 = vmatprep.mubr.f32.mxu0 0.0
    %949 = vmatmul.mubr.f32.gmra.mrb[0].mxu0 %v880
    %v950 = vpop.f32.mrb[0].mxu0
    %v951 = vadd.f32 0.0, %v950
    %v952 = vpop.f32.mrb[0].mxu0
    %953 = vdwg.mxu0
    %v954 = vmul.f32 %v951, 0.35355338
    %v955 = vsel %vm189, %v954, -1e+30
    %v956 = vsel %vm193, %v955, -inf
    %957 = vmax.xlane.f32.xlu0 %v956
    %v958 = vpop.xlane.xlu0 %957
    %v959 = vsub.f32 %v955, %v958
    %v960 = vmul.f32 %v959, 1.442695
    %v961 = vpow.pop %v960
    %v962 = vsel %vm193, %v961, 0.0
    %963 = vadd.xlane.f32.xlu0 %v962
    %v964 = vpop.xlane.xlu0 %963
    %v965 = vrcp.pop %v964
    %v966 = vmul.f32 %v961, %v965
    %967 = vrot.lane.b32.xlu0 %v182, 64
    %v968 = vpop.permute.xlu0 %967
    %v971 = vsel %vm193, %v966, 0
    %973 = vmatprep.subr.mxu0 0.0
    %974 = vmatpush1.msra.mxu0 %v968
    %975 = vmatprep.subr.mxu0 0.0
    %976 = vmatpush1.msra.mxu0 0.0
    %977 = vmatprep.subr.mxu0 0.0
    %978 = vmatpush1.msra.mxu0 0.0
    %979 = vmatprep.subr.mxu0 0.0
    %980 = vmatpush1.msra.mxu0 0.0
    %981 = vmatprep.subr.mxu0 0.0
    %982 = vmatpush1.msra.mxu0 0.0
    %983 = vmatprep.subr.mxu0 0.0
    %984 = vmatpush1.msra.mxu0 0.0
    %985 = vmatprep.subr.mxu0 0.0
    %986 = vmatpush1.msra.mxu0 0.0
    %987 = vmatprep.subr.mxu0 0.0
    %988 = vmatpush1.msra.mxu0 0.0
    %989 = vmatprep.subr.mxu0 0.0
    %990 = vmatpush1.msra.mxu0 0.0
    %991 = vmatprep.subr.mxu0 0.0
    %992 = vmatpush1.msra.mxu0 0.0
    %993 = vmatprep.subr.mxu0 0.0
    %994 = vmatpush1.msra.mxu0 0.0
    %995 = vmatprep.subr.mxu0 0.0
    %996 = vmatpush1.msra.mxu0 0.0
    %997 = vmatprep.subr.mxu0 0.0
    %998 = vmatpush1.msra.mxu0 0.0
    %999 = vmatprep.subr.mxu0 0.0
    %1000 = vmatpush1.msra.mxu0 0.0
    %1001 = vmatprep.subr.mxu0 0.0
    %1002 = vmatpush1.msra.mxu0 0.0
    %1003 = vmatprep.subr.mxu0 0.0
    %1004 = vmatpush1.msra.mxu0 0.0
    %1005 = vmatprep.subr.mxu0 0.0
    %1006 = vmatpush1.msra.mxu0 0.0
    %1007 = vmatprep.subr.mxu0 0.0
    %1008 = vmatpush1.msra.mxu0 0.0
    %1009 = vmatprep.subr.mxu0 0.0
    %1010 = vmatpush1.msra.mxu0 0.0
    %1011 = vmatprep.subr.mxu0 0.0
    %1012 = vmatpush1.msra.mxu0 0.0
    %1013 = vmatprep.subr.mxu0 0.0
    %1014 = vmatpush1.msra.mxu0 0.0
    %1015 = vmatprep.subr.mxu0 0.0
    %1016 = vmatpush1.msra.mxu0 0.0
    %1017 = vmatprep.subr.mxu0 0.0
    %1018 = vmatpush1.msra.mxu0 0.0
    %1019 = vmatprep.subr.mxu0 0.0
    %1020 = vmatpush1.msra.mxu0 0.0
    %1021 = vmatprep.subr.mxu0 0.0
    %1022 = vmatpush1.msra.mxu0 0.0
    %1023 = vmatprep.subr.mxu0 0.0
    %1024 = vmatpush1.msra.mxu0 0.0
    %1025 = vmatprep.subr.mxu0 0.0
    %1026 = vmatpush1.msra.mxu0 0.0
    %1027 = vmatprep.subr.mxu0 0.0
    %1028 = vmatpush1.msra.mxu0 0.0
    %1029 = vmatprep.subr.mxu0 0.0
    %1030 = vmatpush1.msra.mxu0 0.0
    %1031 = vmatprep.subr.mxu0 0.0
    %1032 = vmatpush1.msra.mxu0 0.0
    %1033 = vmatprep.subr.mxu0 0.0
    %1034 = vmatpush1.msra.mxu0 0.0
    %1035 = vmatprep.subr.mxu0 0.0
    %1036 = vmatpush1.msra.mxu0 0.0
    %1037 = vmatprep.mubr.f32.mxu0 0.0
    %1038 = vmatmul.mubr.f32.gmra.mrb[0].mxu0 %v971
    %v1039 = vpop.f32.mrb[0].mxu0
    %v1040 = vadd.f32 0.0, %v1039
    %v1041 = vpop.f32.mrb[0].mxu0
    %1042 = vdwg.mxu0
    %1043 = vst.msk [vmem:[#allocation2 + $0x8] sm:$0xff] %vm193, %v1040
    %1044 = vrot.lane.b32.xlu0 %v182, 120
    %v1045 = vpop.permute.xlu0 %1044
    %1046 = vrot.lane.b32.xlu0 %v182, 88
    %v1047 = vpop.permute.xlu0 %1046
    %v1048 = vsel %vm193, %v1045, 0
    %v1050 = vsel %vm193, %v1047, 0
    %1052 = vmatprep.subr.mxu0 0.0
    %1053 = vmatpush1.xpose.msra.mxu0 %v1050
    %1054 = vmatprep.subr.mxu0 0.0
    %1055 = vmatpush1.xpose.msra.mxu0 0.0
    %1056 = vmatprep.subr.mxu0 0.0
    %1057 = vmatpush1.xpose.msra.mxu0 0.0
    %1058 = vmatprep.subr.mxu0 0.0
    %1059 = vmatpush1.xpose.msra.mxu0 0.0
    %1060 = vmatprep.subr.mxu0 0.0
    %1061 = vmatpush1.xpose.msra.mxu0 0.0
    %1062 = vmatprep.subr.mxu0 0.0
    %1063 = vmatpush1.xpose.msra.mxu0 0.0
    %1064 = vmatprep.subr.mxu0 0.0
    %1065 = vmatpush1.xpose.msra.mxu0 0.0
    %1066 = vmatprep.subr.mxu0 0.0
    %1067 = vmatpush1.xpose.msra.mxu0 0.0
    %1068 = vmatprep.subr.mxu0 0.0
    %1069 = vmatpush1.xpose.msra.mxu0 0.0
    %1070 = vmatprep.subr.mxu0 0.0
    %1071 = vmatpush1.xpose.msra.mxu0 0.0
    %1072 = vmatprep.subr.mxu0 0.0
    %1073 = vmatpush1.xpose.msra.mxu0 0.0
    %1074 = vmatprep.subr.mxu0 0.0
    %1075 = vmatpush1.xpose.msra.mxu0 0.0
    %1076 = vmatprep.subr.mxu0 0.0
    %1077 = vmatpush1.xpose.msra.mxu0 0.0
    %1078 = vmatprep.subr.mxu0 0.0
    %1079 = vmatpush1.xpose.msra.mxu0 0.0
    %1080 = vmatprep.subr.mxu0 0.0
    %1081 = vmatpush1.xpose.msra.mxu0 0.0
    %1082 = vmatprep.subr.mxu0 0.0
    %1083 = vmatpush1.xpose.msra.mxu0 0.0
    %1084 = vmatprep.subr.mxu0 0.0
    %1085 = vmatpush1.xpose.msra.mxu0 0.0
    %1086 = vmatprep.subr.mxu0 0.0
    %1087 = vmatpush1.xpose.msra.mxu0 0.0
    %1088 = vmatprep.subr.mxu0 0.0
    %1089 = vmatpush1.xpose.msra.mxu0 0.0
    %1090 = vmatprep.subr.mxu0 0.0
    %1091 = vmatpush1.xpose.msra.mxu0 0.0
    %1092 = vmatprep.subr.mxu0 0.0
    %1093 = vmatpush1.xpose.msra.mxu0 0.0
    %1094 = vmatprep.subr.mxu0 0.0
    %1095 = vmatpush1.xpose.msra.mxu0 0.0
    %1096 = vmatprep.subr.mxu0 0.0
    %1097 = vmatpush1.xpose.msra.mxu0 0.0
    %1098 = vmatprep.subr.mxu0 0.0
    %1099 = vmatpush1.xpose.msra.mxu0 0.0
    %1100 = vmatprep.subr.mxu0 0.0
    %1101 = vmatpush1.xpose.msra.mxu0 0.0
    %1102 = vmatprep.subr.mxu0 0.0
    %1103 = vmatpush1.xpose.msra.mxu0 0.0
    %1104 = vmatprep.subr.mxu0 0.0
    %1105 = vmatpush1.xpose.msra.mxu0 0.0
    %1106 = vmatprep.subr.mxu0 0.0
    %1107 = vmatpush1.xpose.msra.mxu0 0.0
    %1108 = vmatprep.subr.mxu0 0.0
    %1109 = vmatpush1.xpose.msra.mxu0 0.0
    %1110 = vmatprep.subr.mxu0 0.0
    %1111 = vmatpush1.xpose.msra.mxu0 0.0
    %1112 = vmatprep.subr.mxu0 0.0
    %1113 = vmatpush1.xpose.msra.mxu0 0.0
    %1114 = vmatprep.subr.mxu0 0.0
    %1115 = vmatpush1.xpose.msra.mxu0 0.0
    %1116 = vmatprep.mubr.f32.mxu0 0.0
    %1117 = vmatmul.mubr.f32.gmra.mrb[0].mxu0 %v1048
    %v1118 = vpop.f32.mrb[0].mxu0
    %v1119 = vadd.f32 0.0, %v1118
    %v1120 = vpop.f32.mrb[0].mxu0
    %1121 = vdwg.mxu0
    %v1122 = vmul.f32 %v1119, 0.35355338
    %v1123 = vsel %vm189, %v1122, -1e+30
    %v1124 = vsel %vm193, %v1123, -inf
    %1125 = vmax.xlane.f32.xlu0 %v1124
    %v1126 = vpop.xlane.xlu0 %1125
    %v1127 = vsub.f32 %v1123, %v1126
    %v1128 = vmul.f32 %v1127, 1.442695
    %v1129 = vpow.pop %v1128
    %v1130 = vsel %vm193, %v1129, 0.0
    %1131 = vadd.xlane.f32.xlu0 %v1130
    %v1132 = vpop.xlane.xlu0 %1131
    %v1133 = vrcp.pop %v1132
    %v1134 = vmul.f32 %v1129, %v1133
    %1135 = vrot.lane.b32.xlu0 %v182, 56
    %v1136 = vpop.permute.xlu0 %1135
    %v1139 = vsel %vm193, %v1134, 0
    %1141 = vmatprep.subr.mxu0 0.0
    %1142 = vmatpush1.msra.mxu0 %v1136
    %1143 = vmatprep.subr.mxu0 0.0
    %1144 = vmatpush1.msra.mxu0 0.0
    %1145 = vmatprep.subr.mxu0 0.0
    %1146 = vmatpush1.msra.mxu0 0.0
    %1147 = vmatprep.subr.mxu0 0.0
    %1148 = vmatpush1.msra.mxu0 0.0
    %1149 = vmatprep.subr.mxu0 0.0
    %1150 = vmatpush1.msra.mxu0 0.0
    %1151 = vmatprep.subr.mxu0 0.0
    %1152 = vmatpush1.msra.mxu0 0.0
    %1153 = vmatprep.subr.mxu0 0.0
    %1154 = vmatpush1.msra.mxu0 0.0
    %1155 = vmatprep.subr.mxu0 0.0
    %1156 = vmatpush1.msra.mxu0 0.0
    %1157 = vmatprep.subr.mxu0 0.0
    %1158 = vmatpush1.msra.mxu0 0.0
    %1159 = vmatprep.subr.mxu0 0.0
    %1160 = vmatpush1.msra.mxu0 0.0
    %1161 = vmatprep.subr.mxu0 0.0
    %1162 = vmatpush1.msra.mxu0 0.0
    %1163 = vmatprep.subr.mxu0 0.0
    %1164 = vmatpush1.msra.mxu0 0.0
    %1165 = vmatprep.subr.mxu0 0.0
    %1166 = vmatpush1.msra.mxu0 0.0
    %1167 = vmatprep.subr.mxu0 0.0
    %1168 = vmatpush1.msra.mxu0 0.0
    %1169 = vmatprep.subr.mxu0 0.0
    %1170 = vmatpush1.msra.mxu0 0.0
    %1171 = vmatprep.subr.mxu0 0.0
    %1172 = vmatpush1.msra.mxu0 0.0
    %1173 = vmatprep.subr.mxu0 0.0
    %1174 = vmatpush1.msra.mxu0 0.0
    %1175 = vmatprep.subr.mxu0 0.0
    %1176 = vmatpush1.msra.mxu0 0.0
    %1177 = vmatprep.subr.mxu0 0.0
    %1178 = vmatpush1.msra.mxu0 0.0
    %1179 = vmatprep.subr.mxu0 0.0
    %1180 = vmatpush1.msra.mxu0 0.0
    %1181 = vmatprep.subr.mxu0 0.0
    %1182 = vmatpush1.msra.mxu0 0.0
    %1183 = vmatprep.subr.mxu0 0.0
    %1184 = vmatpush1.msra.mxu0 0.0
    %1185 = vmatprep.subr.mxu0 0.0
    %1186 = vmatpush1.msra.mxu0 0.0
    %1187 = vmatprep.subr.mxu0 0.0
    %1188 = vmatpush1.msra.mxu0 0.0
    %1189 = vmatprep.subr.mxu0 0.0
    %1190 = vmatpush1.msra.mxu0 0.0
    %1191 = vmatprep.subr.mxu0 0.0
    %1192 = vmatpush1.msra.mxu0 0.0
    %1193 = vmatprep.subr.mxu0 0.0
    %1194 = vmatpush1.msra.mxu0 0.0
    %1195 = vmatprep.subr.mxu0 0.0
    %1196 = vmatpush1.msra.mxu0 0.0
    %1197 = vmatprep.subr.mxu0 0.0
    %1198 = vmatpush1.msra.mxu0 0.0
    %1199 = vmatprep.subr.mxu0 0.0
    %1200 = vmatpush1.msra.mxu0 0.0
    %1201 = vmatprep.subr.mxu0 0.0
    %1202 = vmatpush1.msra.mxu0 0.0
    %1203 = vmatprep.subr.mxu0 0.0
    %1204 = vmatpush1.msra.mxu0 0.0
    %1205 = vmatprep.mubr.f32.mxu0 0.0
    %1206 = vmatmul.mubr.f32.gmra.mrb[0].mxu0 %v1139
    %v1207 = vpop.f32.mrb[0].mxu0
    %v1208 = vadd.f32 0.0, %v1207
    %v1209 = vpop.f32.mrb[0].mxu0
    %1210 = vdwg.mxu0
    %1212 = vrot.lane.b32.xlu0 %v1208, 8
    %v1213 = vpop.permute.xlu0 %1212
    %1215 = vst.msk [vmem:[#allocation2 + $0x8] sm:$0xff] %vm529, %v1213
    %1216 = vrot.lane.b32.xlu0 %v182, 112
    %v1217 = vpop.permute.xlu0 %1216
    %1218 = vrot.lane.b32.xlu0 %v182, 80
    %v1219 = vpop.permute.xlu0 %1218
    %v1220 = vsel %vm193, %v1217, 0
    %v1222 = vsel %vm193, %v1219, 0
    %1224 = vmatprep.subr.mxu0 0.0
    %1225 = vmatpush1.xpose.msra.mxu0 %v1222
    %1226 = vmatprep.subr.mxu0 0.0
    %1227 = vmatpush1.xpose.msra.mxu0 0.0
    %1228 = vmatprep.subr.mxu0 0.0
    %1229 = vmatpush1.xpose.msra.mxu0 0.0
    %1230 = vmatprep.subr.mxu0 0.0
    %1231 = vmatpush1.xpose.msra.mxu0 0.0
    %1232 = vmatprep.subr.mxu0 0.0
    %1233 = vmatpush1.xpose.msra.mxu0 0.0
    %1234 = vmatprep.subr.mxu0 0.0
    %1235 = vmatpush1.xpose.msra.mxu0 0.0
    %1236 = vmatprep.subr.mxu0 0.0
    %1237 = vmatpush1.xpose.msra.mxu0 0.0
    %1238 = vmatprep.subr.mxu0 0.0
    %1239 = vmatpush1.xpose.msra.mxu0 0.0
    %1240 = vmatprep.subr.mxu0 0.0
    %1241 = vmatpush1.xpose.msra.mxu0 0.0
    %1242 = vmatprep.subr.mxu0 0.0
    %1243 = vmatpush1.xpose.msra.mxu0 0.0
    %1244 = vmatprep.subr.mxu0 0.0
    %1245 = vmatpush1.xpose.msra.mxu0 0.0
    %1246 = vmatprep.subr.mxu0 0.0
    %1247 = vmatpush1.xpose.msra.mxu0 0.0
    %1248 = vmatprep.subr.mxu0 0.0
    %1249 = vmatpush1.xpose.msra.mxu0 0.0
    %1250 = vmatprep.subr.mxu0 0.0
    %1251 = vmatpush1.xpose.msra.mxu0 0.0
    %1252 = vmatprep.subr.mxu0 0.0
    %1253 = vmatpush1.xpose.msra.mxu0 0.0
    %1254 = vmatprep.subr.mxu0 0.0
    %1255 = vmatpush1.xpose.msra.mxu0 0.0
    %1256 = vmatprep.subr.mxu0 0.0
    %1257 = vmatpush1.xpose.msra.mxu0 0.0
    %1258 = vmatprep.subr.mxu0 0.0
    %1259 = vmatpush1.xpose.msra.mxu0 0.0
    %1260 = vmatprep.subr.mxu0 0.0
    %1261 = vmatpush1.xpose.msra.mxu0 0.0
    %1262 = vmatprep.subr.mxu0 0.0
    %1263 = vmatpush1.xpose.msra.mxu0 0.0
    %1264 = vmatprep.subr.mxu0 0.0
    %1265 = vmatpush1.xpose.msra.mxu0 0.0
    %1266 = vmatprep.subr.mxu0 0.0
    %1267 = vmatpush1.xpose.msra.mxu0 0.0
    %1268 = vmatprep.subr.mxu0 0.0
    %1269 = vmatpush1.xpose.msra.mxu0 0.0
    %1270 = vmatprep.subr.mxu0 0.0
    %1271 = vmatpush1.xpose.msra.mxu0 0.0
    %1272 = vmatprep.subr.mxu0 0.0
    %1273 = vmatpush1.xpose.msra.mxu0 0.0
    %1274 = vmatprep.subr.mxu0 0.0
    %1275 = vmatpush1.xpose.msra.mxu0 0.0
    %1276 = vmatprep.subr.mxu0 0.0
    %1277 = vmatpush1.xpose.msra.mxu0 0.0
    %1278 = vmatprep.subr.mxu0 0.0
    %1279 = vmatpush1.xpose.msra.mxu0 0.0
    %1280 = vmatprep.subr.mxu0 0.0
    %1281 = vmatpush1.xpose.msra.mxu0 0.0
    %1282 = vmatprep.subr.mxu0 0.0
    %1283 = vmatpush1.xpose.msra.mxu0 0.0
    %1284 = vmatprep.subr.mxu0 0.0
    %1285 = vmatpush1.xpose.msra.mxu0 0.0
    %1286 = vmatprep.subr.mxu0 0.0
    %1287 = vmatpush1.xpose.msra.mxu0 0.0
    %1288 = vmatprep.mubr.f32.mxu0 0.0
    %1289 = vmatmul.mubr.f32.gmra.mrb[0].mxu0 %v1220
    %v1290 = vpop.f32.mrb[0].mxu0
    %v1291 = vadd.f32 0.0, %v1290
    %v1292 = vpop.f32.mrb[0].mxu0
    %1293 = vdwg.mxu0
    %v1294 = vmul.f32 %v1291, 0.35355338
    %v1295 = vsel %vm189, %v1294, -1e+30
    %v1296 = vsel %vm193, %v1295, -inf
    %1297 = vmax.xlane.f32.xlu0 %v1296
    %v1298 = vpop.xlane.xlu0 %1297
    %v1299 = vsub.f32 %v1295, %v1298
    %v1300 = vmul.f32 %v1299, 1.442695
    %v1301 = vpow.pop %v1300
    %v1302 = vsel %vm193, %v1301, 0.0
    %1303 = vadd.xlane.f32.xlu0 %v1302
    %v1304 = vpop.xlane.xlu0 %1303
    %v1305 = vrcp.pop %v1304
    %v1306 = vmul.f32 %v1301, %v1305
    %1307 = vrot.lane.b32.xlu0 %v182, 48
    %v1308 = vpop.permute.xlu0 %1307
    %v1311 = vsel %vm193, %v1306, 0
    %1313 = vmatprep.subr.mxu0 0.0
    %1314 = vmatpush1.msra.mxu0 %v1308
    %1315 = vmatprep.subr.mxu0 0.0
    %1316 = vmatpush1.msra.mxu0 0.0
    %1317 = vmatprep.subr.mxu0 0.0
    %1318 = vmatpush1.msra.mxu0 0.0
    %1319 = vmatprep.subr.mxu0 0.0
    %1320 = vmatpush1.msra.mxu0 0.0
    %1321 = vmatprep.subr.mxu0 0.0
    %1322 = vmatpush1.msra.mxu0 0.0
    %1323 = vmatprep.subr.mxu0 0.0
    %1324 = vmatpush1.msra.mxu0 0.0
    %1325 = vmatprep.subr.mxu0 0.0
    %1326 = vmatpush1.msra.mxu0 0.0
    %1327 = vmatprep.subr.mxu0 0.0
    %1328 = vmatpush1.msra.mxu0 0.0
    %1329 = vmatprep.subr.mxu0 0.0
    %1330 = vmatpush1.msra.mxu0 0.0
    %1331 = vmatprep.subr.mxu0 0.0
    %1332 = vmatpush1.msra.mxu0 0.0
    %1333 = vmatprep.subr.mxu0 0.0
    %1334 = vmatpush1.msra.mxu0 0.0
    %1335 = vmatprep.subr.mxu0 0.0
    %1336 = vmatpush1.msra.mxu0 0.0
    %1337 = vmatprep.subr.mxu0 0.0
    %1338 = vmatpush1.msra.mxu0 0.0
    %1339 = vmatprep.subr.mxu0 0.0
    %1340 = vmatpush1.msra.mxu0 0.0
    %1341 = vmatprep.subr.mxu0 0.0
    %1342 = vmatpush1.msra.mxu0 0.0
    %1343 = vmatprep.subr.mxu0 0.0
    %1344 = vmatpush1.msra.mxu0 0.0
    %1345 = vmatprep.subr.mxu0 0.0
    %1346 = vmatpush1.msra.mxu0 0.0
    %1347 = vmatprep.subr.mxu0 0.0
    %1348 = vmatpush1.msra.mxu0 0.0
    %1349 = vmatprep.subr.mxu0 0.0
    %1350 = vmatpush1.msra.mxu0 0.0
    %1351 = vmatprep.subr.mxu0 0.0
    %1352 = vmatpush1.msra.mxu0 0.0
    %1353 = vmatprep.subr.mxu0 0.0
    %1354 = vmatpush1.msra.mxu0 0.0
    %1355 = vmatprep.subr.mxu0 0.0
    %1356 = vmatpush1.msra.mxu0 0.0
    %1357 = vmatprep.subr.mxu0 0.0
    %1358 = vmatpush1.msra.mxu0 0.0
    %1359 = vmatprep.subr.mxu0 0.0
    %1360 = vmatpush1.msra.mxu0 0.0
    %1361 = vmatprep.subr.mxu0 0.0
    %1362 = vmatpush1.msra.mxu0 0.0
    %1363 = vmatprep.subr.mxu0 0.0
    %1364 = vmatpush1.msra.mxu0 0.0
    %1365 = vmatprep.subr.mxu0 0.0
    %1366 = vmatpush1.msra.mxu0 0.0
    %1367 = vmatprep.subr.mxu0 0.0
    %1368 = vmatpush1.msra.mxu0 0.0
    %1369 = vmatprep.subr.mxu0 0.0
    %1370 = vmatpush1.msra.mxu0 0.0
    %1371 = vmatprep.subr.mxu0 0.0
    %1372 = vmatpush1.msra.mxu0 0.0
    %1373 = vmatprep.subr.mxu0 0.0
    %1374 = vmatpush1.msra.mxu0 0.0
    %1375 = vmatprep.subr.mxu0 0.0
    %1376 = vmatpush1.msra.mxu0 0.0
    %1377 = vmatprep.mubr.f32.mxu0 0.0
    %1378 = vmatmul.mubr.f32.gmra.mrb[0].mxu0 %v1311
    %v1379 = vpop.f32.mrb[0].mxu0
    %v1380 = vadd.f32 0.0, %v1379
    %v1381 = vpop.f32.mrb[0].mxu0
    %1382 = vdwg.mxu0
    %1384 = vrot.lane.b32.xlu0 %v1380, 16
    %v1385 = vpop.permute.xlu0 %1384
    %1387 = vst.msk [vmem:[#allocation2 + $0x8] sm:$0xff] %vm702, %v1385
    %1388 = vrot.lane.b32.xlu0 %v182, 104
    %v1389 = vpop.permute.xlu0 %1388
    %1390 = vrot.lane.b32.xlu0 %v182, 72
    %v1391 = vpop.permute.xlu0 %1390
    %v1392 = vsel %vm193, %v1389, 0
    %v1394 = vsel %vm193, %v1391, 0
    %1396 = vmatprep.subr.mxu0 0.0
    %1397 = vmatpush1.xpose.msra.mxu0 %v1394
    %1398 = vmatprep.subr.mxu0 0.0
    %1399 = vmatpush1.xpose.msra.mxu0 0.0
    %1400 = vmatprep.subr.mxu0 0.0
    %1401 = vmatpush1.xpose.msra.mxu0 0.0
    %1402 = vmatprep.subr.mxu0 0.0
    %1403 = vmatpush1.xpose.msra.mxu0 0.0
    %1404 = vmatprep.subr.mxu0 0.0
    %1405 = vmatpush1.xpose.msra.mxu0 0.0
    %1406 = vmatprep.subr.mxu0 0.0
    %1407 = vmatpush1.xpose.msra.mxu0 0.0
    %1408 = vmatprep.subr.mxu0 0.0
    %1409 = vmatpush1.xpose.msra.mxu0 0.0
    %1410 = vmatprep.subr.mxu0 0.0
    %1411 = vmatpush1.xpose.msra.mxu0 0.0
    %1412 = vmatprep.subr.mxu0 0.0
    %1413 = vmatpush1.xpose.msra.mxu0 0.0
    %1414 = vmatprep.subr.mxu0 0.0
    %1415 = vmatpush1.xpose.msra.mxu0 0.0
    %1416 = vmatprep.subr.mxu0 0.0
    %1417 = vmatpush1.xpose.msra.mxu0 0.0
    %1418 = vmatprep.subr.mxu0 0.0
    %1419 = vmatpush1.xpose.msra.mxu0 0.0
    %1420 = vmatprep.subr.mxu0 0.0
    %1421 = vmatpush1.xpose.msra.mxu0 0.0
    %1422 = vmatprep.subr.mxu0 0.0
    %1423 = vmatpush1.xpose.msra.mxu0 0.0
    %1424 = vmatprep.subr.mxu0 0.0
    %1425 = vmatpush1.xpose.msra.mxu0 0.0
    %1426 = vmatprep.subr.mxu0 0.0
    %1427 = vmatpush1.xpose.msra.mxu0 0.0
    %1428 = vmatprep.subr.mxu0 0.0
    %1429 = vmatpush1.xpose.msra.mxu0 0.0
    %1430 = vmatprep.subr.mxu0 0.0
    %1431 = vmatpush1.xpose.msra.mxu0 0.0
    %1432 = vmatprep.subr.mxu0 0.0
    %1433 = vmatpush1.xpose.msra.mxu0 0.0
    %1434 = vmatprep.subr.mxu0 0.0
    %1435 = vmatpush1.xpose.msra.mxu0 0.0
    %1436 = vmatprep.subr.mxu0 0.0
    %1437 = vmatpush1.xpose.msra.mxu0 0.0
    %1438 = vmatprep.subr.mxu0 0.0
    %1439 = vmatpush1.xpose.msra.mxu0 0.0
    %1440 = vmatprep.subr.mxu0 0.0
    %1441 = vmatpush1.xpose.msra.mxu0 0.0
    %1442 = vmatprep.subr.mxu0 0.0
    %1443 = vmatpush1.xpose.msra.mxu0 0.0
    %1444 = vmatprep.subr.mxu0 0.0
    %1445 = vmatpush1.xpose.msra.mxu0 0.0
    %1446 = vmatprep.subr.mxu0 0.0
    %1447 = vmatpush1.xpose.msra.mxu0 0.0
    %1448 = vmatprep.subr.mxu0 0.0
    %1449 = vmatpush1.xpose.msra.mxu0 0.0
    %1450 = vmatprep.subr.mxu0 0.0
    %1451 = vmatpush1.xpose.msra.mxu0 0.0
    %1452 = vmatprep.subr.mxu0 0.0
    %1453 = vmatpush1.xpose.msra.mxu0 0.0
    %1454 = vmatprep.subr.mxu0 0.0
    %1455 = vmatpush1.xpose.msra.mxu0 0.0
    %1456 = vmatprep.subr.mxu0 0.0
    %1457 = vmatpush1.xpose.msra.mxu0 0.0
    %1458 = vmatprep.subr.mxu0 0.0
    %1459 = vmatpush1.xpose.msra.mxu0 0.0
    %1460 = vmatprep.mubr.f32.mxu0 0.0
    %1461 = vmatmul.mubr.f32.gmra.mrb[0].mxu0 %v1392
    %v1462 = vpop.f32.mrb[0].mxu0
    %v1463 = vadd.f32 0.0, %v1462
    %v1464 = vpop.f32.mrb[0].mxu0
    %1465 = vdwg.mxu0
    %v1466 = vmul.f32 %v1463, 0.35355338
    %v1467 = vsel %vm189, %v1466, -1e+30
    %v1468 = vsel %vm193, %v1467, -inf
    %1469 = vmax.xlane.f32.xlu0 %v1468
    %v1470 = vpop.xlane.xlu0 %1469
    %v1471 = vsub.f32 %v1467, %v1470
    %v1472 = vmul.f32 %v1471, 1.442695
    %v1473 = vpow.pop %v1472
    %v1474 = vsel %vm193, %v1473, 0.0
    %1475 = vadd.xlane.f32.xlu0 %v1474
    %v1476 = vpop.xlane.xlu0 %1475
    %v1477 = vrcp.pop %v1476
    %v1478 = vmul.f32 %v1473, %v1477
    %1479 = vrot.lane.b32.xlu0 %v182, 40
    %v1480 = vpop.permute.xlu0 %1479
    %v1483 = vsel %vm193, %v1478, 0
    %1485 = vmatprep.subr.mxu0 0.0
    %1486 = vmatpush1.msra.mxu0 %v1480
    %1487 = vmatprep.subr.mxu0 0.0
    %1488 = vmatpush1.msra.mxu0 0.0
    %1489 = vmatprep.subr.mxu0 0.0
    %1490 = vmatpush1.msra.mxu0 0.0
    %1491 = vmatprep.subr.mxu0 0.0
    %1492 = vmatpush1.msra.mxu0 0.0
    %1493 = vmatprep.subr.mxu0 0.0
    %1494 = vmatpush1.msra.mxu0 0.0
    %1495 = vmatprep.subr.mxu0 0.0
    %1496 = vmatpush1.msra.mxu0 0.0
    %1497 = vmatprep.subr.mxu0 0.0
    %1498 = vmatpush1.msra.mxu0 0.0
    %1499 = vmatprep.subr.mxu0 0.0
    %1500 = vmatpush1.msra.mxu0 0.0
    %1501 = vmatprep.subr.mxu0 0.0
    %1502 = vmatpush1.msra.mxu0 0.0
    %1503 = vmatprep.subr.mxu0 0.0
    %1504 = vmatpush1.msra.mxu0 0.0
    %1505 = vmatprep.subr.mxu0 0.0
    %1506 = vmatpush1.msra.mxu0 0.0
    %1507 = vmatprep.subr.mxu0 0.0
    %1508 = vmatpush1.msra.mxu0 0.0
    %1509 = vmatprep.subr.mxu0 0.0
    %1510 = vmatpush1.msra.mxu0 0.0
    %1511 = vmatprep.subr.mxu0 0.0
    %1512 = vmatpush1.msra.mxu0 0.0
    %1513 = vmatprep.subr.mxu0 0.0
    %1514 = vmatpush1.msra.mxu0 0.0
    %1515 = vmatprep.subr.mxu0 0.0
    %1516 = vmatpush1.msra.mxu0 0.0
    %1517 = vmatprep.subr.mxu0 0.0
    %1518 = vmatpush1.msra.mxu0 0.0
    %1519 = vmatprep.subr.mxu0 0.0
    %1520 = vmatpush1.msra.mxu0 0.0
    %1521 = vmatprep.subr.mxu0 0.0
    %1522 = vmatpush1.msra.mxu0 0.0
    %1523 = vmatprep.subr.mxu0 0.0
    %1524 = vmatpush1.msra.mxu0 0.0
    %1525 = vmatprep.subr.mxu0 0.0
    %1526 = vmatpush1.msra.mxu0 0.0
    %1527 = vmatprep.subr.mxu0 0.0
    %1528 = vmatpush1.msra.mxu0 0.0
    %1529 = vmatprep.subr.mxu0 0.0
    %1530 = vmatpush1.msra.mxu0 0.0
    %1531 = vmatprep.subr.mxu0 0.0
    %1532 = vmatpush1.msra.mxu0 0.0
    %1533 = vmatprep.subr.mxu0 0.0
    %1534 = vmatpush1.msra.mxu0 0.0
    %1535 = vmatprep.subr.mxu0 0.0
    %1536 = vmatpush1.msra.mxu0 0.0
    %1537 = vmatprep.subr.mxu0 0.0
    %1538 = vmatpush1.msra.mxu0 0.0
    %1539 = vmatprep.subr.mxu0 0.0
    %1540 = vmatpush1.msra.mxu0 0.0
    %1541 = vmatprep.subr.mxu0 0.0
    %1542 = vmatpush1.msra.mxu0 0.0
    %1543 = vmatprep.subr.mxu0 0.0
    %1544 = vmatpush1.msra.mxu0 0.0
    %1545 = vmatprep.subr.mxu0 0.0
    %1546 = vmatpush1.msra.mxu0 0.0
    %1547 = vmatprep.subr.mxu0 0.0
    %1548 = vmatpush1.msra.mxu0 0.0
    %1549 = vmatprep.mubr.f32.mxu0 0.0
    %1550 = vmatmul.mubr.f32.gmra.mrb[0].mxu0 %v1483
    %v1551 = vpop.f32.mrb[0].mxu0
    %v1552 = vadd.f32 0.0, %v1551
    %v1553 = vpop.f32.mrb[0].mxu0
    %1554 = vdwg.mxu0
    %1556 = vrot.lane.b32.xlu0 %v1552, 24
    %v1557 = vpop.permute.xlu0 %1556
    %1559 = vst.msk [vmem:[#allocation2 + $0x8] sm:$0xff] %vm875, %v1557
    %v1560 = vld [vmem:[#allocation2] sm:$0xff]
    %v1561 = vld [vmem:[#allocation2 + $0x8] sm:$0xff]
    %v1562 = vld [vmem:[%s5] sm:$0xff]
    %v1563 = vld [vmem:[%s5 + $0x8] sm:$0xff]
    %v1564 = vld [vmem:[%s5 + $0x10] sm:$0xff]
    %v1565 = vld [vmem:[%s5 + $0x18] sm:$0xff]
    %v1566 = vld [vmem:[%s6] sm:$0x1]
    %v1568 = vlaneseq
    %v1569 = vshrl.u32 %v1568, 7
    %v1570 = vsub.s32 0, %v1569
    %v1571 = vrot.slane %v1566, %v1570
    %v1574 = vsel %vm49, %v1560, 0
    %v1577 = vsel %vm49, %v1561, 0
    %1579 = vmatprep.subr.mxu0 0.0
    %1580 = vmatpush1.msra.mxu0 %v1562
    %1581 = vmatprep.subr.mxu0 0.0
    %1582 = vmatpush1.msra.mxu0 %v1563
    %1583 = vmatprep.subr.mxu0 0.0
    %1584 = vmatpush1.msra.mxu0 %v1564
    %1585 = vmatprep.subr.mxu0 0.0
    %1586 = vmatpush1.msra.mxu0 %v1565
    %1587 = vmatprep.subr.mxu0 0.0
    %1588 = vmatpush1.msra.mxu0 0.0
    %1589 = vmatprep.subr.mxu0 0.0
    %1590 = vmatpush1.msra.mxu0 0.0
    %1591 = vmatprep.subr.mxu0 0.0
    %1592 = vmatpush1.msra.mxu0 0.0
    %1593 = vmatprep.subr.mxu0 0.0
    %1594 = vmatpush1.msra.mxu0 0.0
    %1595 = vmatprep.subr.mxu0 0.0
    %1596 = vmatpush1.msra.mxu0 0.0
    %1597 = vmatprep.subr.mxu0 0.0
    %1598 = vmatpush1.msra.mxu0 0.0
    %1599 = vmatprep.subr.mxu0 0.0
    %1600 = vmatpush1.msra.mxu0 0.0
    %1601 = vmatprep.subr.mxu0 0.0
    %1602 = vmatpush1.msra.mxu0 0.0
    %1603 = vmatprep.subr.mxu0 0.0
    %1604 = vmatpush1.msra.mxu0 0.0
    %1605 = vmatprep.subr.mxu0 0.0
    %1606 = vmatpush1.msra.mxu0 0.0
    %1607 = vmatprep.subr.mxu0 0.0
    %1608 = vmatpush1.msra.mxu0 0.0
    %1609 = vmatprep.subr.mxu0 0.0
    %1610 = vmatpush1.msra.mxu0 0.0
    %1611 = vmatprep.subr.mxu0 0.0
    %1612 = vmatpush1.msra.mxu0 0.0
    %1613 = vmatprep.subr.mxu0 0.0
    %1614 = vmatpush1.msra.mxu0 0.0
    %1615 = vmatprep.subr.mxu0 0.0
    %1616 = vmatpush1.msra.mxu0 0.0
    %1617 = vmatprep.subr.mxu0 0.0
    %1618 = vmatpush1.msra.mxu0 0.0
    %1619 = vmatprep.subr.mxu0 0.0
    %1620 = vmatpush1.msra.mxu0 0.0
    %1621 = vmatprep.subr.mxu0 0.0
    %1622 = vmatpush1.msra.mxu0 0.0
    %1623 = vmatprep.subr.mxu0 0.0
    %1624 = vmatpush1.msra.mxu0 0.0
    %1625 = vmatprep.subr.mxu0 0.0
    %1626 = vmatpush1.msra.mxu0 0.0
    %1627 = vmatprep.subr.mxu0 0.0
    %1628 = vmatpush1.msra.mxu0 0.0
    %1629 = vmatprep.subr.mxu0 0.0
    %1630 = vmatpush1.msra.mxu0 0.0
    %1631 = vmatprep.subr.mxu0 0.0
    %1632 = vmatpush1.msra.mxu0 0.0
    %1633 = vmatprep.subr.mxu0 0.0
    %1634 = vmatpush1.msra.mxu0 0.0
    %1635 = vmatprep.subr.mxu0 0.0
    %1636 = vmatpush1.msra.mxu0 0.0
    %1637 = vmatprep.subr.mxu0 0.0
    %1638 = vmatpush1.msra.mxu0 0.0
    %1639 = vmatprep.subr.mxu0 0.0
    %1640 = vmatpush1.msra.mxu0 0.0
    %1641 = vmatprep.subr.mxu0 0.0
    %1642 = vmatpush1.msra.mxu0 0.0
    %1643 = vmatprep.mubr.f32.mxu0 0.0
    %1644 = vmatmul.mubr.f32.gmra.mrb[0].mxu0 %v1574
    %v1645 = vpop.f32.mrb[0].mxu0
    %v1646 = vadd.f32 %v1571, %v1645
    %v1647 = vpop.f32.mrb[0].mxu0
    %1648 = vmatprep.mubr.f32.mxu0 0.0
    %1649 = vmatmul.mubr.f32.gmra.mrb[0].mxu0 %v1577
    %v1650 = vpop.f32.mrb[0].mxu0
    %v1651 = vadd.f32 %v1571, %v1650
    %v1652 = vpop.f32.mrb[0].mxu0
    %1653 = vdwg.mxu0
    %v1654 = vadd.f32 %v45, %v1646
    %v1655 = vadd.f32 %v46, %v1651
    %v1656 = vld [vmem:[%s7] sm:$0x1]
    %v1657 = vld [vmem:[%s8] sm:$0x1]
    %v1658 = vsel %vm49, %v1654, 0.0
    %1659 = vadd.xlane.f32.xlu0 %v1658
    %v1660 = vpop.xlane.xlu0 %1659
    %v1661 = vsel %vm49, %v1655, 0.0
    %1662 = vadd.xlane.f32.xlu0 %v1661
    %v1663 = vpop.xlane.xlu0 %1662
    %v1664 = vmul.f32 %v1660, %v56
    %v1665 = vmul.f32 %v1663, %v56
    %v1666 = vsub.f32 %v1654, %v1664
    %v1667 = vsub.f32 %v1655, %v1665
    %v1668 = vmul.f32 %v1666, %v1666
    %v1669 = vmul.f32 %v1667, %v1667
    %v1670 = vsel %vm49, %v1668, 0.0
    %1671 = vadd.xlane.f32.xlu0 %v1670
    %v1672 = vpop.xlane.xlu0 %1671
    %v1673 = vsel %vm49, %v1669, 0.0
    %1674 = vadd.xlane.f32.xlu0 %v1673
    %v1675 = vpop.xlane.xlu0 %1674
    %v1676 = vmul.f32 %v1672, %v56
    %v1677 = vmul.f32 %v1675, %v56
    %v1678 = vadd.f32 %v1676, 1e-05
    %v1679 = vadd.f32 %v1677, 1e-05
    %v1680 = vrsqrt.pop %v1678
    %v1681 = vrsqrt.pop %v1679
    %v1682 = vmul.f32 %v1666, %v1680
    %v1683 = vmul.f32 %v1667, %v1681
    %v1685 = vlaneseq
    %v1686 = vshrl.u32 %v1685, 7
    %v1687 = vsub.s32 0, %v1686
    %v1688 = vrot.slane %v1656, %v1687
    %v1690 = vmul.f32 %v1682, %v1688
    %v1691 = vmul.f32 %v1683, %v1688
    %v1693 = vlaneseq
    %v1694 = vshrl.u32 %v1693, 7
    %v1695 = vsub.s32 0, %v1694
    %v1696 = vrot.slane %v1657, %v1695
    %v1698 = vadd.f32 %v1690, %v1696
    %v1699 = vadd.f32 %v1691, %v1696
    %v1700 = vld [vmem:[%s9] sm:$0xff]
    %v1701 = vld [vmem:[%s9 + $0x8] sm:$0xff]
    %v1702 = vld [vmem:[%s9 + $0x10] sm:$0xff]
    %v1703 = vld [vmem:[%s9 + $0x18] sm:$0xff]
    %v1704 = vld [vmem:[%s10] sm:$0x1]
    %v1706 = vlaneseq
    %v1707 = vshrl.u32 %v1706, 7
    %v1708 = vsub.s32 0, %v1707
    %v1709 = vrot.slane %v1704, %v1708
    %v1712 = vsel %vm49, %v1698, 0
    %v1715 = vsel %vm49, %v1699, 0
    %1717 = vmatprep.subr.mxu0 0.0
    %1718 = vmatpush1.msra.mxu0 %v1700
    %1719 = vmatprep.subr.mxu0 0.0
    %1720 = vmatpush1.msra.mxu0 %v1701
    %1721 = vmatprep.subr.mxu0 0.0
    %1722 = vmatpush1.msra.mxu0 %v1702
    %1723 = vmatprep.subr.mxu0 0.0
    %1724 = vmatpush1.msra.mxu0 %v1703
    %1725 = vmatprep.subr.mxu0 0.0
    %1726 = vmatpush1.msra.mxu0 0.0
    %1727 = vmatprep.subr.mxu0 0.0
    %1728 = vmatpush1.msra.mxu0 0.0
    %1729 = vmatprep.subr.mxu0 0.0
    %1730 = vmatpush1.msra.mxu0 0.0
    %1731 = vmatprep.subr.mxu0 0.0
    %1732 = vmatpush1.msra.mxu0 0.0
    %1733 = vmatprep.subr.mxu0 0.0
    %1734 = vmatpush1.msra.mxu0 0.0
    %1735 = vmatprep.subr.mxu0 0.0
    %1736 = vmatpush1.msra.mxu0 0.0
    %1737 = vmatprep.subr.mxu0 0.0
    %1738 = vmatpush1.msra.mxu0 0.0
    %1739 = vmatprep.subr.mxu0 0.0
    %1740 = vmatpush1.msra.mxu0 0.0
    %1741 = vmatprep.subr.mxu0 0.0
    %1742 = vmatpush1.msra.mxu0 0.0
    %1743 = vmatprep.subr.mxu0 0.0
    %1744 = vmatpush1.msra.mxu0 0.0
    %1745 = vmatprep.subr.mxu0 0.0
    %1746 = vmatpush1.msra.mxu0 0.0
    %1747 = vmatprep.subr.mxu0 0.0
    %1748 = vmatpush1.msra.mxu0 0.0
    %1749 = vmatprep.subr.mxu0 0.0
    %1750 = vmatpush1.msra.mxu0 0.0
    %1751 = vmatprep.subr.mxu0 0.0
    %1752 = vmatpush1.msra.mxu0 0.0
    %1753 = vmatprep.subr.mxu0 0.0
    %1754 = vmatpush1.msra.mxu0 0.0
    %1755 = vmatprep.subr.mxu0 0.0
    %1756 = vmatpush1.msra.mxu0 0.0
    %1757 = vmatprep.subr.mxu0 0.0
    %1758 = vmatpush1.msra.mxu0 0.0
    %1759 = vmatprep.subr.mxu0 0.0
    %1760 = vmatpush1.msra.mxu0 0.0
    %1761 = vmatprep.subr.mxu0 0.0
    %1762 = vmatpush1.msra.mxu0 0.0
    %1763 = vmatprep.subr.mxu0 0.0
    %1764 = vmatpush1.msra.mxu0 0.0
    %1765 = vmatprep.subr.mxu0 0.0
    %1766 = vmatpush1.msra.mxu0 0.0
    %1767 = vmatprep.subr.mxu0 0.0
    %1768 = vmatpush1.msra.mxu0 0.0
    %1769 = vmatprep.subr.mxu0 0.0
    %1770 = vmatpush1.msra.mxu0 0.0
    %1771 = vmatprep.subr.mxu0 0.0
    %1772 = vmatpush1.msra.mxu0 0.0
    %1773 = vmatprep.subr.mxu0 0.0
    %1774 = vmatpush1.msra.mxu0 0.0
    %1775 = vmatprep.subr.mxu0 0.0
    %1776 = vmatpush1.msra.mxu0 0.0
    %1777 = vmatprep.subr.mxu0 0.0
    %1778 = vmatpush1.msra.mxu0 0.0
    %1779 = vmatprep.subr.mxu0 0.0
    %1780 = vmatpush1.msra.mxu0 0.0
    %1781 = vmatprep.mubr.f32.mxu0 0.0
    %1782 = vmatmul.mubr.f32.gmra.mrb[0].mxu0 %v1712
    %v1783 = vpop.f32.mrb[0].mxu0
    %v1784 = vadd.f32 %v1709, %v1783
    %v1785 = vpop.f32.mrb[0].mxu0
    %1786 = vmatprep.mubr.f32.mxu0 0.0
    %1787 = vmatmul.mubr.f32.gmra.mrb[0].mxu0 %v1715
    %v1788 = vpop.f32.mrb[0].mxu0
    %v1789 = vadd.f32 %v1709, %v1788
    %v1790 = vpop.f32.mrb[0].mxu0
    %1791 = vdwg.mxu0
    %v1792 = vmul.f32 %v1784, 0.5
    %v1793 = vmul.f32 %v1789, 0.5
    %v1794 = vmul.f32 %v1784, 0.044715
    %v1795 = vmul.f32 %v1789, 0.044715
    %v1796 = vmul.f32 %v1794, %v1784
    %v1797 = vmul.f32 %v1795, %v1789
    %v1798 = vmul.f32 %v1796, %v1784
    %v1799 = vmul.f32 %v1797, %v1789
    %v1800 = vadd.f32 %v1784, %v1798
    %v1801 = vadd.f32 %v1789, %v1799
    %v1802 = vmul.f32 %v1800, 0.7978846
    %v1803 = vmul.f32 %v1801, 0.7978846
    %v1804 = vtanh.pop %v1802
    %v1805 = vtanh.pop %v1803
    %v1806 = vadd.f32 %v1804, 1.0
    %v1807 = vadd.f32 %v1805, 1.0
    %v1808 = vmul.f32 %v1792, %v1806
    %v1809 = vmul.f32 %v1793, %v1807
    %v1810 = vld [vmem:[%s11] sm:$0xff]
    %v1811 = vld [vmem:[%s11 + $0x8] sm:$0xff]
    %v1812 = vld [vmem:[%s11 + $0x10] sm:$0xff]
    %v1813 = vld [vmem:[%s11 + $0x18] sm:$0xff]
    %v1814 = vld [vmem:[%s11 + $0x20] sm:$0xff]
    %v1815 = vld [vmem:[%s11 + $0x28] sm:$0xff]
    %v1816 = vld [vmem:[%s11 + $0x30] sm:$0xff]
    %v1817 = vld [vmem:[%s11 + $0x38] sm:$0xff]
    %v1818 = vld [vmem:[%s11 + $0x40] sm:$0xff]
    %v1819 = vld [vmem:[%s11 + $0x48] sm:$0xff]
    %v1820 = vld [vmem:[%s11 + $0x50] sm:$0xff]
    %v1821 = vld [vmem:[%s11 + $0x58] sm:$0xff]
    %v1822 = vld [vmem:[%s11 + $0x60] sm:$0xff]
    %v1823 = vld [vmem:[%s11 + $0x68] sm:$0xff]
    %v1824 = vld [vmem:[%s11 + $0x70] sm:$0xff]
    %v1825 = vld [vmem:[%s11 + $0x78] sm:$0xff]
    %v1826 = vld [vmem:[%s12] sm:$0x1]
    %v1828 = vlaneseq
    %v1829 = vshrl.u32 %v1828, 7
    %v1830 = vsub.s32 0, %v1829
    %v1831 = vrot.slane %v1826, %v1830
    %1833 = vmatprep.subr.mxu0 0.0
    %1834 = vmatpush1.msra.mxu0 %v1810
    %1835 = vmatprep.subr.mxu0 0.0
    %1836 = vmatpush1.msra.mxu0 %v1811
    %1837 = vmatprep.subr.mxu0 0.0
    %1838 = vmatpush1.msra.mxu0 %v1812
    %1839 = vmatprep.subr.mxu0 0.0
    %1840 = vmatpush1.msra.mxu0 %v1813
    %1841 = vmatprep.subr.mxu0 0.0
    %1842 = vmatpush1.msra.mxu0 %v1814
    %1843 = vmatprep.subr.mxu0 0.0
    %1844 = vmatpush1.msra.mxu0 %v1815
    %1845 = vmatprep.subr.mxu0 0.0
    %1846 = vmatpush1.msra.mxu0 %v1816
    %1847 = vmatprep.subr.mxu0 0.0
    %1848 = vmatpush1.msra.mxu0 %v1817
    %1849 = vmatprep.subr.mxu0 0.0
    %1850 = vmatpush1.msra.mxu0 %v1818
    %1851 = vmatprep.subr.mxu0 0.0
    %1852 = vmatpush1.msra.mxu0 %v1819
    %1853 = vmatprep.subr.mxu0 0.0
    %1854 = vmatpush1.msra.mxu0 %v1820
    %1855 = vmatprep.subr.mxu0 0.0
    %1856 = vmatpush1.msra.mxu0 %v1821
    %1857 = vmatprep.subr.mxu0 0.0
    %1858 = vmatpush1.msra.mxu0 %v1822
    %1859 = vmatprep.subr.mxu0 0.0
    %1860 = vmatpush1.msra.mxu0 %v1823
    %1861 = vmatprep.subr.mxu0 0.0
    %1862 = vmatpush1.msra.mxu0 %v1824
    %1863 = vmatprep.subr.mxu0 0.0
    %1864 = vmatpush1.msra.mxu0 %v1825
    %1865 = vmatprep.subr.mxu0 0.0
    %1866 = vmatpush1.msra.mxu0 0.0
    %1867 = vmatprep.subr.mxu0 0.0
    %1868 = vmatpush1.msra.mxu0 0.0
    %1869 = vmatprep.subr.mxu0 0.0
    %1870 = vmatpush1.msra.mxu0 0.0
    %1871 = vmatprep.subr.mxu0 0.0
    %1872 = vmatpush1.msra.mxu0 0.0
    %1873 = vmatprep.subr.mxu0 0.0
    %1874 = vmatpush1.msra.mxu0 0.0
    %1875 = vmatprep.subr.mxu0 0.0
    %1876 = vmatpush1.msra.mxu0 0.0
    %1877 = vmatprep.subr.mxu0 0.0
    %1878 = vmatpush1.msra.mxu0 0.0
    %1879 = vmatprep.subr.mxu0 0.0
    %1880 = vmatpush1.msra.mxu0 0.0
    %1881 = vmatprep.subr.mxu0 0.0
    %1882 = vmatpush1.msra.mxu0 0.0
    %1883 = vmatprep.subr.mxu0 0.0
    %1884 = vmatpush1.msra.mxu0 0.0
    %1885 = vmatprep.subr.mxu0 0.0
    %1886 = vmatpush1.msra.mxu0 0.0
    %1887 = vmatprep.subr.mxu0 0.0
    %1888 = vmatpush1.msra.mxu0 0.0
    %1889 = vmatprep.subr.mxu0 0.0
    %1890 = vmatpush1.msra.mxu0 0.0
    %1891 = vmatprep.subr.mxu0 0.0
    %1892 = vmatpush1.msra.mxu0 0.0
    %1893 = vmatprep.subr.mxu0 0.0
    %1894 = vmatpush1.msra.mxu0 0.0
    %1895 = vmatprep.subr.mxu0 0.0
    %1896 = vmatpush1.msra.mxu0 0.0
    %1897 = vmatprep.mubr.f32.mxu0 0.0
    %1898 = vmatmul.mubr.f32.gmra.mrb[0].mxu0 %v1808
    %v1899 = vpop.f32.mrb[0].mxu0
    %v1900 = vadd.f32 %v1831, %v1899
    %v1901 = vpop.f32.mrb[0].mxu0
    %1902 = vmatprep.mubr.f32.mxu0 0.0
    %1903 = vmatmul.mubr.f32.gmra.mrb[0].mxu0 %v1809
    %v1904 = vpop.f32.mrb[0].mxu0
    %v1905 = vadd.f32 %v1831, %v1904
    %v1906 = vpop.f32.mrb[0].mxu0
    %1907 = vdwg.mxu0
    %v1908 = vadd.f32 %v1654, %v1900
    %v1909 = vadd.f32 %v1655, %v1905
    %1910 = vst.msk [vmem:[#allocation3] sm:$0xff] %vm49, %v1908
    %1911 = vst.msk [vmem:[#allocation3 + $0x8] sm:$0xff] %vm49, %v1909
    // Predicated region
    $region54: #{tpu_custom_call.1} parent=1 // pred_check
      _
    $region55: #{tpu_custom_call.1} parent=1 // pred_check_branch
      %1913 = sbr.rel (0) target = $region57
    $region56: #{tpu_custom_call.1} parent=1 // pred_region
      %s1915 = ssub.s32 256, 256
      %1916 = vsyncadd [#allocation4], %s1915
      %s1917 = sshll.u32 [#allocation3], 4
      %s1918 = int_to_ptr.vmem [resolvable:$true] %s1917
      %1923 = dma.vmem_to_hbm [thread:$0]  %s1918, 256, %s13, [#allocation4], 128, 128, 8
    $region57: #{tpu_custom_call.1} parent=1 // pred_fallthru
      _
    // Predicated region
    $region58: #{tpu_custom_call.1} parent=1 // pred_check
      _
    $region59: #{tpu_custom_call.1} parent=1 // pred_check_branch
      %1925 = sbr.rel (0) target = $region61
    $region60: #{tpu_custom_call.1} parent=1 // pred_region
      %1926 = dma.done [#allocation4], 256
    $region61: #{tpu_custom_call.1} parent=1 // pred_fallthru
      _
    %1927 = vsyncpa [#allocation4], 1

</llo_original>
